<compile_context>
chip_gen: v7x
topology: tpu7x:2x2x1
jax: 0.10.0
libtpu: 0.0.40
codegen_flags: <defaults>
</compile_context>

<pallas_src>
import jax
import jax.numpy as jnp
from jax import lax
from jax.experimental import pallas as pl
from jax.experimental.pallas import tpu as pltpu


def _bayesian_linear_kernel(
    x_ref,      # [TB, TK]
    wmu_ref,    # [TN, TK]
    wlv_ref,    # [TN, TK]
    weps_ref,   # [TN, TK]
    bmu_ref,    # [1, TN]
    blv_ref,    # [1, TN]
    beps_ref,   # [1, TN]
    y_ref,      # [TB, TN]
    kl_ref,     # [1, 8, 128]  per-OUT-tile KL partial (same value in every slot)
    acc_ref,    # [TB, TN] f32 scratch
):
    i = pl.program_id(1)            # batch tile
    k = pl.program_id(2)            # IN (reduction) tile
    nk = pl.num_programs(2)

    # --- reparameterized weight sample for this (OUT, IN) tile ------------
    wmu = wmu_ref[...].astype(jnp.float32)
    wlv = wlv_ref[...].astype(jnp.float32)
    w_std = jnp.exp(0.5 * wlv)
    w_sample = wmu + w_std * weps_ref[...].astype(jnp.float32)

    # --- matmul accumulation (y = x @ w_sample.T), NT contraction ---------
    @pl.when(k == 0)
    def _init_acc():
        acc_ref[...] = jnp.zeros_like(acc_ref)

    x = x_ref[...].astype(jnp.float32)
    acc_ref[...] += lax.dot_general(
        x, w_sample,
        dimension_numbers=(((1,), (1,)), ((), ())),   # contract IN vs IN
        preferred_element_type=jnp.float32)

    # --- KL: once per weight tile (first batch tile only) -----------------
    # exp(logvar) == w_std**2, so reuse the std computed for sampling.
    @pl.when(i == 0)
    def _kl():
        kl_w = 0.5 * jnp.sum(w_std * w_std + wmu * wmu - wlv - 1.0)

        @pl.when(k == 0)
        def _kl_init():
            bmu = bmu_ref[...].astype(jnp.float32)
            blv = blv_ref[...].astype(jnp.float32)
            b_std = jnp.exp(0.5 * blv)
            kl_b = 0.5 * jnp.sum(b_std * b_std + bmu * bmu - blv - 1.0)
            kl_ref[...] = jnp.zeros_like(kl_ref) + (kl_w + kl_b)

        @pl.when(k > 0)
        def _kl_acc():
            kl_ref[...] = kl_ref[...] + kl_w

    # --- finalize: add sampled bias and write the output tile -------------
    @pl.when(k == nk - 1)
    def _finalize():
        bmu = bmu_ref[...].astype(jnp.float32)
        blv = blv_ref[...].astype(jnp.float32)
        b_std = jnp.exp(0.5 * blv)
        b_sample = bmu + b_std * beps_ref[...].astype(jnp.float32)
        y_ref[...] = (acc_ref[...] + b_sample).astype(y_ref.dtype)


def _pick_tile(dim, targets):
    for t in targets:
        if dim >= t and dim % t == 0:
            return t
    return dim  # small / ragged dim: use the full extent as a single block


def bayesian_linear_forward(x, weight_mu, weight_logvar, bias_mu, bias_logvar,
                            eps_w, eps_b):
    """Fused BayesianLinear forward. Returns (y, kl)."""
    B, IN = x.shape
    OUT, IN2 = weight_mu.shape
    assert IN == IN2, "weight / input feature mismatch"

    TB = _pick_tile(B, (128, 64, 32, 16, 8))
    TN = _pick_tile(OUT, (256, 128))      # MXU / lane aligned output tile
    TK = _pick_tile(IN, (256, 128))       # MXU aligned reduction tile

    nj, ni, nk = OUT // TN, B // TB, IN // TK

    bmu2 = bias_mu.reshape(1, OUT)
    blv2 = bias_logvar.reshape(1, OUT)
    beps2 = eps_b.reshape(1, OUT)

    y, kl_partial = pl.pallas_call(
        _bayesian_linear_kernel,
        out_shape=(
            jax.ShapeDtypeStruct((B, OUT), jnp.float32),
            jax.ShapeDtypeStruct((nj, 8, 128), jnp.float32),
        ),
        grid_spec=pltpu.PrefetchScalarGridSpec(
            num_scalar_prefetch=0,
            grid=(nj, ni, nk),            # (OUT tiles, B tiles, IN reduction)
            in_specs=[
                pl.BlockSpec((TB, TK), lambda j, i, k: (i, k)),   # x
                pl.BlockSpec((TN, TK), lambda j, i, k: (j, k)),   # weight_mu
                pl.BlockSpec((TN, TK), lambda j, i, k: (j, k)),   # weight_logvar
                pl.BlockSpec((TN, TK), lambda j, i, k: (j, k)),   # eps_w
                pl.BlockSpec((1, TN), lambda j, i, k: (0, j)),    # bias_mu
                pl.BlockSpec((1, TN), lambda j, i, k: (0, j)),    # bias_logvar
                pl.BlockSpec((1, TN), lambda j, i, k: (0, j)),    # eps_b
            ],
            out_specs=(
                pl.BlockSpec((TB, TN), lambda j, i, k: (i, j)),       # y
                pl.BlockSpec((1, 8, 128), lambda j, i, k: (j, 0, 0)),  # kl partial
            ),
            scratch_shapes=[pltpu.VMEM((TB, TN), jnp.float32)],
        ),
        compiler_params=pltpu.CompilerParams(
            # OUT tiles are independent -> shard across v7x's 2 TensorCores.
            # Batch / reduction stay "arbitrary" so the per-OUT-tile KL block
            # and the accumulator are handled by a single core.
            dimension_semantics=("parallel", "arbitrary", "arbitrary")),
    )(x, weight_mu, weight_logvar, eps_w, bmu2, blv2, beps2)

    kl = jnp.sum(kl_partial[:, 0, 0])
    return y, kl


def _reference(x, weight_mu, weight_logvar, bias_mu, bias_logvar, eps_w, eps_b):
    w_std = jnp.exp(0.5 * weight_logvar)
    b_std = jnp.exp(0.5 * bias_logvar)
    w = weight_mu + w_std * eps_w
    b = bias_mu + b_std * eps_b
    kl_w = jnp.sum(0.5 * (jnp.exp(weight_logvar) + weight_mu ** 2
                          - weight_logvar - 1.0))
    kl_b = jnp.sum(0.5 * (jnp.exp(bias_logvar) + bias_mu ** 2
                          - bias_logvar - 1.0))
    y = jnp.dot(x, w.T, precision=lax.Precision.HIGHEST) + b
    return y, kl_w + kl_b


if __name__ == "__main__":
    # Small but tiling-exercising shapes: grid = (2 OUT tiles, 1 B tile, 2 IN tiles)
    B, IN, OUT = 16, 512, 512

    key = jax.random.PRNGKey(0)
    kx, kwm, kwl, kbm, kbl, kew, keb = jax.random.split(key, 7)

    x = jax.random.normal(kx, (B, IN), dtype=jnp.float32)

    # Deterministic parameter values (module init is zeros; small random values
    # exercise the sampling / KL math non-trivially).
    weight_mu = 0.1 * jax.random.normal(kwm, (OUT, IN), dtype=jnp.float32)
    weight_logvar = 0.1 * jax.random.normal(kwl, (OUT, IN), dtype=jnp.float32)
    bias_mu = 0.1 * jax.random.normal(kbm, (OUT,), dtype=jnp.float32)
    bias_logvar = 0.1 * jax.random.normal(kbl, (OUT,), dtype=jnp.float32)

    # Reparameterization noise (Normal.rsample eps), drawn once, deterministic.
    eps_w = jax.random.normal(kew, (OUT, IN), dtype=jnp.float32)
    eps_b = jax.random.normal(keb, (OUT,), dtype=jnp.float32)

    fwd = jax.jit(bayesian_linear_forward)
    y, kl = fwd(x, weight_mu, weight_logvar, bias_mu, bias_logvar, eps_w, eps_b)
    jax.block_until_ready((y, kl))

    y_ref, kl_ref = _reference(
        x, weight_mu, weight_logvar, bias_mu, bias_logvar, eps_w, eps_b)

    assert jnp.allclose(y, y_ref, rtol=1e-3, atol=1e-3), "output mismatch"
    assert jnp.allclose(kl, kl_ref, rtol=1e-4, atol=1e-2), "kl mismatch"

    print("KERNEL_OK")
</pallas_src>

<mosaic_0001>
module attributes {stable_mosaic.version = 11 : i64} {
  func.func @_bayesian_linear_kernel(%arg0: i32, %arg1: i32, %arg2: i32, %arg3: memref<16x256xf32, #tpu.memory_space<vmem>>, %arg4: memref<256x256xf32, #tpu.memory_space<vmem>>, %arg5: memref<256x256xf32, #tpu.memory_space<vmem>>, %arg6: memref<256x256xf32, #tpu.memory_space<vmem>>, %arg7: memref<1x256xf32, #tpu.memory_space<vmem>>, %arg8: memref<1x256xf32, #tpu.memory_space<vmem>>, %arg9: memref<1x256xf32, #tpu.memory_space<vmem>>, %arg10: memref<16x256xf32, #tpu.memory_space<vmem>>, %arg11: memref<1x8x128xf32, #tpu.memory_space<vmem>>, %arg12: memref<16x256xf32, #tpu.memory_space<vmem>>) attributes {dimension_semantics = [#tpu.dimension_semantics<parallel>, #tpu.dimension_semantics<arbitrary>, #tpu.dimension_semantics<arbitrary>], iteration_bounds = array<i64: 2, 1, 2>, scalar_prefetch = 0 : i64, scratch_operands = 1 : i64, tpu.core_type = #tpu.core_type<tc>, window_params = [{transform_indices = @transform_0, window_bounds = array<i64: 16, 256>}, {transform_indices = @transform_1, window_bounds = array<i64: 256, 256>}, {transform_indices = @transform_2, window_bounds = array<i64: 256, 256>}, {transform_indices = @transform_3, window_bounds = array<i64: 256, 256>}, {transform_indices = @transform_4, window_bounds = array<i64: 1, 256>}, {transform_indices = @transform_5, window_bounds = array<i64: 1, 256>}, {transform_indices = @transform_6, window_bounds = array<i64: 1, 256>}, {transform_indices = @transform_7, window_bounds = array<i64: 16, 256>}, {transform_indices = @transform_8, window_bounds = array<i64: 1, 8, 128>}]} {
    %c0 = arith.constant 0 : index
    %c0_0 = arith.constant 0 : index
    %0 = vector.load %arg4[%c0, %c0_0] : memref<256x256xf32, #tpu.memory_space<vmem>>, vector<256x256xf32>
    %c0_1 = arith.constant 0 : index
    %c0_2 = arith.constant 0 : index
    %1 = vector.load %arg5[%c0_1, %c0_2] : memref<256x256xf32, #tpu.memory_space<vmem>>, vector<256x256xf32>
    %cst = arith.constant 5.000000e-01 : f32
    %2 = vector.broadcast %cst : f32 to vector<256x256xf32>
    %3 = arith.mulf %2, %1 : vector<256x256xf32>
    %4 = math.exp %3 : vector<256x256xf32>
    %c0_3 = arith.constant 0 : index
    %c0_4 = arith.constant 0 : index
    %5 = vector.load %arg6[%c0_3, %c0_4] : memref<256x256xf32, #tpu.memory_space<vmem>>, vector<256x256xf32>
    %6 = arith.mulf %4, %5 : vector<256x256xf32>
    %7 = arith.addf %0, %6 : vector<256x256xf32>
    %c0_i32 = arith.constant 0 : i32
    %8 = arith.cmpi eq, %arg2, %c0_i32 : i32
    %9 = arith.extui %8 : i1 to i32
    %c0_i32_5 = arith.constant 0 : i32
    %10 = arith.cmpi ne, %9, %c0_i32_5 : i32
    scf.if %10 {
      %cst_16 = arith.constant 0.000000e+00 : f32
      %22 = vector.broadcast %cst_16 : f32 to vector<16x256xf32>
      %c0_17 = arith.constant 0 : index
      %c0_18 = arith.constant 0 : index
      %23 = vector.load %arg12[%c0_17, %c0_18] : memref<16x256xf32, #tpu.memory_space<vmem>>, vector<16x256xf32>
      tpu.vector_store %arg12[%c0_17, %c0_18], %22 {strides = array<i32>} : memref<16x256xf32, #tpu.memory_space<vmem>>, vector<16x256xf32>,
    } else {
    }
    %c0_6 = arith.constant 0 : index
    %c0_7 = arith.constant 0 : index
    %11 = vector.load %arg3[%c0_6, %c0_7] : memref<16x256xf32, #tpu.memory_space<vmem>>, vector<16x256xf32>
    %c0_8 = arith.constant 0 : index
    %c0_9 = arith.constant 0 : index
    %12 = vector.load %arg12[%c0_8, %c0_9] : memref<16x256xf32, #tpu.memory_space<vmem>>, vector<16x256xf32>
    %cst_10 = arith.constant dense<0.000000e+00> : vector<16x256xf32>
    %13 = tpu.matmul %11, %7, %cst_10 {dimension_numbers = #tpu.dot_dimension_numbers<[1], [1], [0], [0], [0, 0, 1, 0], [], []>} : vector<16x256xf32>, vector<256x256xf32>, vector<16x256xf32> -> vector<16x256xf32>
    %14 = arith.addf %12, %13 : vector<16x256xf32>
    %c0_11 = arith.constant 0 : index
    %c0_12 = arith.constant 0 : index
    %15 = vector.load %arg12[%c0_11, %c0_12] : memref<16x256xf32, #tpu.memory_space<vmem>>, vector<16x256xf32>
    tpu.vector_store %arg12[%c0_11, %c0_12], %14 {strides = array<i32>} : memref<16x256xf32, #tpu.memory_space<vmem>>, vector<16x256xf32>,
    %c0_i32_13 = arith.constant 0 : i32
    %16 = arith.cmpi eq, %arg1, %c0_i32_13 : i32
    %17 = arith.extui %16 : i1 to i32
    %c0_i32_14 = arith.constant 0 : i32
    %18 = arith.cmpi ne, %17, %c0_i32_14 : i32
    scf.if %18 {
      %22 = arith.mulf %4, %4 : vector<256x256xf32>
      %23 = arith.mulf %0, %0 : vector<256x256xf32>
      %24 = arith.addf %22, %23 : vector<256x256xf32>
      %25 = arith.subf %24, %1 : vector<256x256xf32>
      %cst_16 = arith.constant 1.000000e+00 : f32
      %26 = vector.broadcast %cst_16 : f32 to vector<256x256xf32>
      %27 = arith.subf %25, %26 : vector<256x256xf32>
      %28 = vector.shape_cast %27 : vector<256x256xf32> to vector<1x256x256xf32>
      %cst_17 = arith.constant dense<0.000000e+00> : vector<1xf32>
      %29 = vector.multi_reduction <add>, %28, %cst_17 [1, 2] : vector<1x256x256xf32> to vector<1xf32>
      %30 = vector.shape_cast %29 : vector<1xf32> to vector<1x1x1xf32>
      %31 = vector.extract %30[0, 0, 0] : f32 from vector<1x1x1xf32>
      %cst_18 = arith.constant 5.000000e-01 : f32
      %32 = arith.mulf %cst_18, %31 : f32
      %c0_i32_19 = arith.constant 0 : i32
      %33 = arith.cmpi eq, %arg2, %c0_i32_19 : i32
      %34 = arith.extui %33 : i1 to i32
      %c0_i32_20 = arith.constant 0 : i32
      %35 = arith.cmpi ne, %34, %c0_i32_20 : i32
      scf.if %35 {
        %c0_23 = arith.constant 0 : index
        %c0_24 = arith.constant 0 : index
        %39 = vector.load %arg7[%c0_23, %c0_24] : memref<1x256xf32, #tpu.memory_space<vmem>>, vector<1x256xf32>
        %c0_25 = arith.constant 0 : index
        %c0_26 = arith.constant 0 : index
        %40 = vector.load %arg8[%c0_25, %c0_26] : memref<1x256xf32, #tpu.memory_space<vmem>>, vector<1x256xf32>
        %cst_27 = arith.constant 5.000000e-01 : f32
        %41 = vector.broadcast %cst_27 : f32 to vector<1x256xf32>
        %42 = arith.mulf %41, %40 : vector<1x256xf32>
        %43 = math.exp %42 : vector<1x256xf32>
        %44 = arith.mulf %43, %43 : vector<1x256xf32>
        %45 = arith.mulf %39, %39 : vector<1x256xf32>
        %46 = arith.addf %44, %45 : vector<1x256xf32>
        %47 = arith.subf %46, %40 : vector<1x256xf32>
        %cst_28 = arith.constant 1.000000e+00 : f32
        %48 = vector.broadcast %cst_28 : f32 to vector<1x256xf32>
        %49 = arith.subf %47, %48 : vector<1x256xf32>
        %50 = vector.shape_cast %49 : vector<1x256xf32> to vector<1x1x256xf32>
        %cst_29 = arith.constant dense<0.000000e+00> : vector<1xf32>
        %51 = vector.multi_reduction <add>, %50, %cst_29 [1, 2] : vector<1x1x256xf32> to vector<1xf32>
        %52 = vector.shape_cast %51 : vector<1xf32> to vector<1x1x1xf32>
        %53 = vector.extract %52[0, 0, 0] : f32 from vector<1x1x1xf32>
        %cst_30 = arith.constant 5.000000e-01 : f32
        %54 = arith.mulf %cst_30, %53 : f32
        %cst_31 = arith.constant 0.000000e+00 : f32
        %55 = vector.broadcast %cst_31 : f32 to vector<1x8x128xf32>
        %56 = arith.addf %32, %54 : f32
        %57 = vector.broadcast %56 : f32 to vector<1x8x128xf32>
        %58 = arith.addf %55, %57 : vector<1x8x128xf32>
        %c0_32 = arith.constant 0 : index
        %c0_33 = arith.constant 0 : index
        %c0_34 = arith.constant 0 : index
        %59 = vector.load %arg11[%c0_32, %c0_33, %c0_34] : memref<1x8x128xf32, #tpu.memory_space<vmem>>, vector<1x8x128xf32>
        tpu.vector_store %arg11[%c0_32, %c0_33, %c0_34], %58 {strides = array<i32>} : memref<1x8x128xf32, #tpu.memory_space<vmem>>, vector<1x8x128xf32>,
      } else {
      }
      %c0_i32_21 = arith.constant 0 : i32
      %36 = arith.cmpi sgt, %arg2, %c0_i32_21 : i32
      %37 = arith.extui %36 : i1 to i32
      %c0_i32_22 = arith.constant 0 : i32
      %38 = arith.cmpi ne, %37, %c0_i32_22 : i32
      scf.if %38 {
        %c0_23 = arith.constant 0 : index
        %c0_24 = arith.constant 0 : index
        %c0_25 = arith.constant 0 : index
        %39 = vector.load %arg11[%c0_23, %c0_24, %c0_25] : memref<1x8x128xf32, #tpu.memory_space<vmem>>, vector<1x8x128xf32>
        %40 = vector.broadcast %32 : f32 to vector<1x8x128xf32>
        %41 = arith.addf %39, %40 : vector<1x8x128xf32>
        %c0_26 = arith.constant 0 : index
        %c0_27 = arith.constant 0 : index
        %c0_28 = arith.constant 0 : index
        %42 = vector.load %arg11[%c0_26, %c0_27, %c0_28] : memref<1x8x128xf32, #tpu.memory_space<vmem>>, vector<1x8x128xf32>
        tpu.vector_store %arg11[%c0_26, %c0_27, %c0_28], %41 {strides = array<i32>} : memref<1x8x128xf32, #tpu.memory_space<vmem>>, vector<1x8x128xf32>,
      } else {
      }
    } else {
    }
    %c1_i32 = arith.constant 1 : i32
    %19 = arith.cmpi eq, %arg2, %c1_i32 : i32
    %20 = arith.extui %19 : i1 to i32
    %c0_i32_15 = arith.constant 0 : i32
    %21 = arith.cmpi ne, %20, %c0_i32_15 : i32
    scf.if %21 {
      %c0_16 = arith.constant 0 : index
      %c0_17 = arith.constant 0 : index
      %22 = vector.load %arg7[%c0_16, %c0_17] : memref<1x256xf32, #tpu.memory_space<vmem>>, vector<1x256xf32>
      %c0_18 = arith.constant 0 : index
      %c0_19 = arith.constant 0 : index
      %23 = vector.load %arg8[%c0_18, %c0_19] : memref<1x256xf32, #tpu.memory_space<vmem>>, vector<1x256xf32>
      %cst_20 = arith.constant 5.000000e-01 : f32
      %24 = vector.broadcast %cst_20 : f32 to vector<1x256xf32>
      %25 = arith.mulf %24, %23 : vector<1x256xf32>
      %26 = math.exp %25 : vector<1x256xf32>
      %c0_21 = arith.constant 0 : index
      %c0_22 = arith.constant 0 : index
      %27 = vector.load %arg9[%c0_21, %c0_22] : memref<1x256xf32, #tpu.memory_space<vmem>>, vector<1x256xf32>
      %28 = arith.mulf %26, %27 : vector<1x256xf32>
      %29 = arith.addf %22, %28 : vector<1x256xf32>
      %c0_23 = arith.constant 0 : index
      %c0_24 = arith.constant 0 : index
      %30 = vector.load %arg12[%c0_23, %c0_24] : memref<16x256xf32, #tpu.memory_space<vmem>>, vector<16x256xf32>
      %31 = vector.broadcast %29 : vector<1x256xf32> to vector<16x256xf32>
      %32 = arith.addf %30, %31 : vector<16x256xf32>
      %c0_25 = arith.constant 0 : index
      %c0_26 = arith.constant 0 : index
      %33 = vector.load %arg10[%c0_25, %c0_26] : memref<16x256xf32, #tpu.memory_space<vmem>>, vector<16x256xf32>
      tpu.vector_store %arg10[%c0_25, %c0_26], %32 {strides = array<i32>} : memref<16x256xf32, #tpu.memory_space<vmem>>, vector<16x256xf32>,
    } else {
    }
    return
  }
  func.func @transform_0(%arg0: i32, %arg1: i32, %arg2: i32) -> (i32, i32) {
    %c0_i32 = arith.constant 0 : i32
    return %arg1, %arg2 : i32, i32
  }
  func.func @transform_1(%arg0: i32, %arg1: i32, %arg2: i32) -> (i32, i32) {
    %c0_i32 = arith.constant 0 : i32
    return %arg0, %arg2 : i32, i32
  }
  func.func @transform_2(%arg0: i32, %arg1: i32, %arg2: i32) -> (i32, i32) {
    %c0_i32 = arith.constant 0 : i32
    return %arg0, %arg2 : i32, i32
  }
  func.func @transform_3(%arg0: i32, %arg1: i32, %arg2: i32) -> (i32, i32) {
    %c0_i32 = arith.constant 0 : i32
    return %arg0, %arg2 : i32, i32
  }
  func.func @transform_4(%arg0: i32, %arg1: i32, %arg2: i32) -> (i32, i32) {
    %c0_i32 = arith.constant 0 : i32
    %c0_i32_0 = arith.constant 0 : i32
    return %c0_i32, %arg0 : i32, i32
  }
  func.func @transform_5(%arg0: i32, %arg1: i32, %arg2: i32) -> (i32, i32) {
    %c0_i32 = arith.constant 0 : i32
    %c0_i32_0 = arith.constant 0 : i32
    return %c0_i32, %arg0 : i32, i32
  }
  func.func @transform_6(%arg0: i32, %arg1: i32, %arg2: i32) -> (i32, i32) {
    %c0_i32 = arith.constant 0 : i32
    %c0_i32_0 = arith.constant 0 : i32
    return %c0_i32, %arg0 : i32, i32
  }
  func.func @transform_7(%arg0: i32, %arg1: i32, %arg2: i32) -> (i32, i32) {
    %c0_i32 = arith.constant 0 : i32
    return %arg1, %arg0 : i32, i32
  }
  func.func @transform_8(%arg0: i32, %arg1: i32, %arg2: i32) -> (i32, i32, i32) {
    %c0_i32 = arith.constant 0 : i32
    %c0_i32_0 = arith.constant 0 : i32
    %c0_i32_1 = arith.constant 0 : i32
    return %arg0, %c0_i32, %c0_i32_0 : i32, i32, i32
  }
}

</mosaic_0001>

<llo_original>
// kernel: bayesian_linear_forward.1
$region0: #{bayesian_linear_forward.1}
  #allocation0 [shape = 'u32[]', space=smem, size = 0x4, offset = 0x4, fixed_abs, tag = 'smem constant byte address 0x4 - core index']
  #allocation1 [shape = 'u32[144,128]{1,0:T(1,128)}', space=vmem, size = 0x12000, scoped, tag = 'internal scratch']
  #allocation2 [shape = 'f32[16,256]{1,0:T(8,128)}', space=vmem, size = 0x4000, scoped, tag = 'scratch operand']
  %s0 = inlined_call_operand.hbm [shape: f32[16,512], index: 0, kind: input, shape index: {}]
  %s1 = inlined_call_operand.hbm [shape: f32[512,512], index: 1, kind: input, shape index: {}]
  %s2 = inlined_call_operand.hbm [shape: f32[512,512], index: 2, kind: input, shape index: {}]
  %s3 = inlined_call_operand.hbm [shape: f32[512,512], index: 3, kind: input, shape index: {}]
  %s4 = inlined_call_operand.vmem [shape: f32[1,512], index: 4, kind: input, shape index: {}]
  %s5 = inlined_call_operand.vmem [shape: f32[1,512], index: 5, kind: input, shape index: {}]
  %s6 = inlined_call_operand.hbm [shape: f32[1,512], index: 6, kind: input, shape index: {}]
  %s7 = inlined_call_operand.hbm [shape: f32[16,512], index: 7, kind: output, shape index: {0}]
  %s8 = inlined_call_operand.vmem [shape: f32[2,8,128], index: 8, kind: output, shape index: {1}]
  %9 = xla_tuple %s7, %s8
  %s10 = sld [smem:[#allocation0]]
  $region109: #{bayesian_linear_forward.1} parent=0
    _
  %s12 = ssub.s32 1, %s10
  %s13 = scalar_select 0, %s12, %s10
  $region1: #{bayesian_linear_forward.1} parent=0
    #allocation3 [shape = 'u8[32768]{0}', space=vmem, size = 0x8000, scoped, tag = 'input window, operand 0']
    #allocation4 [shape = 's32[2]{0}', space=sflag, size = 0x8, scoped, tag = 'scoped memory for bayesian_linear_forward.1']
    #allocation5 [shape = 's32[2]{0}', space=sflag, size = 0x8, scoped, tag = 'scoped memory for bayesian_linear_forward.1']
    #allocation6 [shape = 'u8[524288]{0}', space=vmem, size = 0x80000, scoped, tag = 'input window, operand 1']
    #allocation7 [shape = 's32[2]{0}', space=sflag, size = 0x8, scoped, tag = 'scoped memory for bayesian_linear_forward.1']
    #allocation8 [shape = 'u8[524288]{0}', space=vmem, size = 0x80000, scoped, tag = 'input window, operand 2']
    #allocation9 [shape = 'u8[524288]{0}', space=vmem, size = 0x80000, scoped, tag = 'input window, operand 3']
    #allocation10 [shape = 's32[2]{0}', space=sflag, size = 0x8, scoped, tag = 'scoped memory for bayesian_linear_forward.1']
    #allocation11 [shape = 'u8[2048]{0}', space=vmem, size = 0x800, scoped, tag = 'input window, operand 6']
    #allocation12 [shape = 'u8[32768]{0}', space=vmem, size = 0x8000, scoped, tag = 'output window, operand 0']
    %14 = vsyncpa [#allocation4], 0
    %s15 = scalar_lea.sflag [#allocation4], 1
    %16 = vsyncpa %s15, 0
    %17 = vsyncpa [#allocation7], 0
    %s18 = scalar_lea.sflag [#allocation7], 1
    %19 = vsyncpa %s18, 0
    %20 = vsyncpa [#allocation10], 0
    %s21 = scalar_lea.sflag [#allocation10], 1
    %22 = vsyncpa %s21, 0
    %23 = vsyncpa [#allocation5], 0
    %s24 = scalar_lea.sflag [#allocation5], 1
    %25 = vsyncpa %s24, 0
    loop: start=0, step=1, limit=6
    $region2: #{bayesian_linear_forward.1} parent=1 // loop_pre_header
      _
    $region3: #{bayesian_linear_forward.1} parent=1 // loop_header
      %s27 = sphi 0, %s31
      %p28 = scmp.ge.s32.totalorder %s27, 6
      %s34 = sphi 0, %s53
      %s35 = sphi 0, %s49
      %s36 = sphi 0, %s45
      %s37 = sphi 0, %s34
      %s38 = sphi 0, %s35
      %s39 = sphi 0, %s36
      %s40 = sphi 0, %s37
      %s41 = sphi 0, %s38
      %s42 = sphi 0, %s39
      %s58 = sphi 0, %s60
      %s61 = sphi 0, %s58
      %s62 = sphi 0, %s61
      %s78 = sphi 0, %s62
      %s86 = sphi 0, %s88
      %s89 = sphi 0, %s86
      %s90 = sphi 0, %s89
      %s106 = sphi 0, %s90
      %s114 = sphi 0, %s116
      %s117 = sphi 0, %s114
      %s118 = sphi 0, %s117
      %s134 = sphi 0, %s118
      %s142 = sphi 0, %s144
      %s145 = sphi 0, %s142
      %s146 = sphi 0, %s145
      %s162 = sphi 0, %s146
      %s168 = sphi 0, %s170
      %s171 = sphi 0, %s168
      %s172 = sphi 0, %s171
      %s188 = sphi 0, %s172
      %s194 = sphi 0, %s196
      %s197 = sphi 0, %s194
      %s198 = sphi 0, %s197
      %s214 = sphi 0, %s198
      %s220 = sphi 0, %s222
      %s223 = sphi 0, %s220
      %s224 = sphi 0, %s223
      %s240 = sphi 0, %s224
      %s248 = sphi 0, %s250
      %s251 = sphi 0, %s248
      %s252 = sphi 0, %s251
      %s268 = sphi 0, %s252
      %s274 = sphi 0, %s276
      %s277 = sphi 0, %s274
      %s278 = sphi 0, %s277
      %s294 = sphi 0, %s278
    $region4: #{bayesian_linear_forward.1} parent=1 // loop_header_branch
      %30 = sbr.rel (%p28) target = $region8
    $region5: #{bayesian_linear_forward.1} parent=1 // loop_body
      %s32 = ssub.s32 %s27, 1
      %s33 = ssub.s32 %s27, 2
      %s43 = sadd.s32 1, %s36
      %p44 = scmp.ge.s32.totalorder %s43, 2
      %s45 = scalar_select %p44, 0, %s43
      %s46 = sadd.s32 1, %s35
      %s47 = scalar_select %p44, %s46, %s35
      %p48 = scmp.ge.s32.totalorder %s47, 1
      %s49 = scalar_select %p48, 0, %s47
      %s50 = sadd.s32 1, %s34
      %s51 = scalar_select %p48, %s50, %s34
      %p52 = scmp.ge.s32.totalorder %s51, 2
      %s53 = scalar_select %p52, 0, %s51
      %s54 = ssub.s32 %s35, %s49
      %s55 = ssub.s32 %s36, %s45
      %s56 = sor.u32 %s54, %s55
      %p57 = scmp.eq.s32.totalorder %s56, 0
      %s59 = sadd.s32 %s58, 1
      %s60 = scalar_select %p57, %s58, %s59
      %p63 = pneg %p57
      %p64 = scmp.eq.s32.totalorder %s27, 3
      %p65 = por %p63, %p64
      %p66 = scmp.ne.s32.totalorder %s58, %s61
      %p67 = scmp.eq.s32.totalorder %s27, 0
      %p68 = por %p66, %p67
      %p69 = scmp.ne.s32.totalorder %s58, %s61
      %p70 = scmp.eq.s32.totalorder %s32, 3
      %p71 = por %p69, %p70
      %p72 = scmp.ne.s32.totalorder %s61, %s62
      %p73 = scmp.eq.s32.totalorder %s32, 0
      %p74 = por %p72, %p73
      %p75 = scmp.ne.s32.totalorder %s61, %s62
      %p76 = scmp.eq.s32.totalorder %s33, 3
      %p77 = por %p75, %p76
      %p79 = scmp.ne.s32.totalorder %s62, %s78
      %p80 = scmp.eq.s32.totalorder %s33, 0
      %p81 = por %p79, %p80
      %s82 = ssub.s32 %s34, %s53
      %s83 = ssub.s32 %s36, %s45
      %s84 = sor.u32 %s82, %s83
      %p85 = scmp.eq.s32.totalorder %s84, 0
      %s87 = sadd.s32 %s86, 1
      %s88 = scalar_select %p85, %s86, %s87
      %p91 = pneg %p85
      %p92 = scmp.eq.s32.totalorder %s27, 3
      %p93 = por %p91, %p92
      %p94 = scmp.ne.s32.totalorder %s86, %s89
      %p95 = scmp.eq.s32.totalorder %s27, 0
      %p96 = por %p94, %p95
      %p97 = scmp.ne.s32.totalorder %s86, %s89
      %p98 = scmp.eq.s32.totalorder %s32, 3
      %p99 = por %p97, %p98
      %p100 = scmp.ne.s32.totalorder %s89, %s90
      %p101 = scmp.eq.s32.totalorder %s32, 0
      %p102 = por %p100, %p101
      %p103 = scmp.ne.s32.totalorder %s89, %s90
      %p104 = scmp.eq.s32.totalorder %s33, 3
      %p105 = por %p103, %p104
      %p107 = scmp.ne.s32.totalorder %s90, %s106
      %p108 = scmp.eq.s32.totalorder %s33, 0
      %p109 = por %p107, %p108
      %s110 = ssub.s32 %s34, %s53
      %s111 = ssub.s32 %s36, %s45
      %s112 = sor.u32 %s110, %s111
      %p113 = scmp.eq.s32.totalorder %s112, 0
      %s115 = sadd.s32 %s114, 1
      %s116 = scalar_select %p113, %s114, %s115
      %p119 = pneg %p113
      %p120 = scmp.eq.s32.totalorder %s27, 3
      %p121 = por %p119, %p120
      %p122 = scmp.ne.s32.totalorder %s114, %s117
      %p123 = scmp.eq.s32.totalorder %s27, 0
      %p124 = por %p122, %p123
      %p125 = scmp.ne.s32.totalorder %s114, %s117
      %p126 = scmp.eq.s32.totalorder %s32, 3
      %p127 = por %p125, %p126
      %p128 = scmp.ne.s32.totalorder %s117, %s118
      %p129 = scmp.eq.s32.totalorder %s32, 0
      %p130 = por %p128, %p129
      %p131 = scmp.ne.s32.totalorder %s117, %s118
      %p132 = scmp.eq.s32.totalorder %s33, 3
      %p133 = por %p131, %p132
      %p135 = scmp.ne.s32.totalorder %s118, %s134
      %p136 = scmp.eq.s32.totalorder %s33, 0
      %p137 = por %p135, %p136
      %s138 = ssub.s32 %s34, %s53
      %s139 = ssub.s32 %s36, %s45
      %s140 = sor.u32 %s138, %s139
      %p141 = scmp.eq.s32.totalorder %s140, 0
      %s143 = sadd.s32 %s142, 1
      %s144 = scalar_select %p141, %s142, %s143
      %p147 = pneg %p141
      %p148 = scmp.eq.s32.totalorder %s27, 3
      %p149 = por %p147, %p148
      %p150 = scmp.ne.s32.totalorder %s142, %s145
      %p151 = scmp.eq.s32.totalorder %s27, 0
      %p152 = por %p150, %p151
      %p153 = scmp.ne.s32.totalorder %s142, %s145
      %p154 = scmp.eq.s32.totalorder %s32, 3
      %p155 = por %p153, %p154
      %p156 = scmp.ne.s32.totalorder %s145, %s146
      %p157 = scmp.eq.s32.totalorder %s32, 0
      %p158 = por %p156, %p157
      %p159 = scmp.ne.s32.totalorder %s145, %s146
      %p160 = scmp.eq.s32.totalorder %s33, 3
      %p161 = por %p159, %p160
      %p163 = scmp.ne.s32.totalorder %s146, %s162
      %p164 = scmp.eq.s32.totalorder %s33, 0
      %p165 = por %p163, %p164
      %s166 = ssub.s32 %s34, %s53
      %p167 = scmp.eq.s32.totalorder %s166, 0
      %s169 = sadd.s32 %s168, 1
      %s170 = scalar_select %p167, %s168, %s169
      %p173 = pneg %p167
      %p174 = scmp.eq.s32.totalorder %s27, 3
      %p175 = por %p173, %p174
      %p176 = scmp.ne.s32.totalorder %s168, %s171
      %p177 = scmp.eq.s32.totalorder %s27, 0
      %p178 = por %p176, %p177
      %p179 = scmp.ne.s32.totalorder %s168, %s171
      %p180 = scmp.eq.s32.totalorder %s32, 3
      %p181 = por %p179, %p180
      %p182 = scmp.ne.s32.totalorder %s171, %s172
      %p183 = scmp.eq.s32.totalorder %s32, 0
      %p184 = por %p182, %p183
      %p185 = scmp.ne.s32.totalorder %s171, %s172
      %p186 = scmp.eq.s32.totalorder %s33, 3
      %p187 = por %p185, %p186
      %p189 = scmp.ne.s32.totalorder %s172, %s188
      %p190 = scmp.eq.s32.totalorder %s33, 0
      %p191 = por %p189, %p190
      %s192 = ssub.s32 %s34, %s53
      %p193 = scmp.eq.s32.totalorder %s192, 0
      %s195 = sadd.s32 %s194, 1
      %s196 = scalar_select %p193, %s194, %s195
      %p199 = pneg %p193
      %p200 = scmp.eq.s32.totalorder %s27, 3
      %p201 = por %p199, %p200
      %p202 = scmp.ne.s32.totalorder %s194, %s197
      %p203 = scmp.eq.s32.totalorder %s27, 0
      %p204 = por %p202, %p203
      %p205 = scmp.ne.s32.totalorder %s194, %s197
      %p206 = scmp.eq.s32.totalorder %s32, 3
      %p207 = por %p205, %p206
      %p208 = scmp.ne.s32.totalorder %s197, %s198
      %p209 = scmp.eq.s32.totalorder %s32, 0
      %p210 = por %p208, %p209
      %p211 = scmp.ne.s32.totalorder %s197, %s198
      %p212 = scmp.eq.s32.totalorder %s33, 3
      %p213 = por %p211, %p212
      %p215 = scmp.ne.s32.totalorder %s198, %s214
      %p216 = scmp.eq.s32.totalorder %s33, 0
      %p217 = por %p215, %p216
      %s218 = ssub.s32 %s34, %s53
      %p219 = scmp.eq.s32.totalorder %s218, 0
      %s221 = sadd.s32 %s220, 1
      %s222 = scalar_select %p219, %s220, %s221
      %p225 = pneg %p219
      %p226 = scmp.eq.s32.totalorder %s27, 3
      %p227 = por %p225, %p226
      %p228 = scmp.ne.s32.totalorder %s220, %s223
      %p229 = scmp.eq.s32.totalorder %s27, 0
      %p230 = por %p228, %p229
      %p231 = scmp.ne.s32.totalorder %s220, %s223
      %p232 = scmp.eq.s32.totalorder %s32, 3
      %p233 = por %p231, %p232
      %p234 = scmp.ne.s32.totalorder %s223, %s224
      %p235 = scmp.eq.s32.totalorder %s32, 0
      %p236 = por %p234, %p235
      %p237 = scmp.ne.s32.totalorder %s223, %s224
      %p238 = scmp.eq.s32.totalorder %s33, 3
      %p239 = por %p237, %p238
      %p241 = scmp.ne.s32.totalorder %s224, %s240
      %p242 = scmp.eq.s32.totalorder %s33, 0
      %p243 = por %p241, %p242
      %s244 = ssub.s32 %s35, %s49
      %s245 = ssub.s32 %s34, %s53
      %s246 = sor.u32 %s244, %s245
      %p247 = scmp.eq.s32.totalorder %s246, 0
      %s249 = sadd.s32 %s248, 1
      %s250 = scalar_select %p247, %s248, %s249
      %p253 = pneg %p247
      %p254 = scmp.eq.s32.totalorder %s27, 3
      %p255 = por %p253, %p254
      %p256 = scmp.ne.s32.totalorder %s248, %s251
      %p257 = scmp.eq.s32.totalorder %s27, 0
      %p258 = por %p256, %p257
      %p259 = scmp.ne.s32.totalorder %s248, %s251
      %p260 = scmp.eq.s32.totalorder %s32, 3
      %p261 = por %p259, %p260
      %p262 = scmp.ne.s32.totalorder %s251, %s252
      %p263 = scmp.eq.s32.totalorder %s32, 0
      %p264 = por %p262, %p263
      %p265 = scmp.ne.s32.totalorder %s251, %s252
      %p266 = scmp.eq.s32.totalorder %s33, 3
      %p267 = por %p265, %p266
      %p269 = scmp.ne.s32.totalorder %s252, %s268
      %p270 = scmp.eq.s32.totalorder %s33, 0
      %p271 = por %p269, %p270
      %s272 = ssub.s32 %s34, %s53
      %p273 = scmp.eq.s32.totalorder %s272, 0
      %s275 = sadd.s32 %s274, 1
      %s276 = scalar_select %p273, %s274, %s275
      %p279 = pneg %p273
      %p280 = scmp.eq.s32.totalorder %s27, 3
      %p281 = por %p279, %p280
      %p282 = scmp.ne.s32.totalorder %s274, %s277
      %p283 = scmp.eq.s32.totalorder %s27, 0
      %p284 = por %p282, %p283
      %p285 = scmp.ne.s32.totalorder %s274, %s277
      %p286 = scmp.eq.s32.totalorder %s32, 3
      %p287 = por %p285, %p286
      %p288 = scmp.ne.s32.totalorder %s277, %s278
      %p289 = scmp.eq.s32.totalorder %s32, 0
      %p290 = por %p288, %p289
      %p291 = scmp.ne.s32.totalorder %s277, %s278
      %p292 = scmp.eq.s32.totalorder %s33, 3
      %p293 = por %p291, %p292
      %p295 = scmp.ne.s32.totalorder %s278, %s294
      %p296 = scmp.eq.s32.totalorder %s33, 0
      %p297 = por %p295, %p296
      %p298 = scmp.le.s32.totalorder 1, %s27
      %p299 = scmp.lt.s32.totalorder %s27, 5
      %p300 = pnand %p298, %p299
      %p301 = pneg %p300
      // Predicated region
      $region9: #{bayesian_linear_forward.1} parent=5 // pred_check
        _
      $region10: #{bayesian_linear_forward.1} parent=5 // pred_check_branch
        %303 = sbr.rel (%p300) target = $region12
      $region11: #{bayesian_linear_forward.1} parent=5 // pred_region
        %s304 = ssub.s32 %s27, 1
      $region12: #{bayesian_linear_forward.1} parent=5 // pred_fallthru
        _
      %p305 = scmp.lt.s32.totalorder %s27, 4
      // Predicated region
      $region13: #{bayesian_linear_forward.1} parent=5 // pred_check
        %p306 = pneg %p305
      $region14: #{bayesian_linear_forward.1} parent=5 // pred_check_branch
        %308 = sbr.rel (%p306) target = $region16
      $region15: #{bayesian_linear_forward.1} parent=5 // pred_region
        // Predicated region
        $region17: #{bayesian_linear_forward.1} parent=15 // pred_check
          %p309 = pneg %p68
        $region18: #{bayesian_linear_forward.1} parent=15 // pred_check_branch
          %311 = sbr.rel (%p309) target = $region20
        $region19: #{bayesian_linear_forward.1} parent=15 // pred_region
          %s312 = sand.u32 %s58, 1
          %s313 = scalar_lea.sflag [#allocation4], %s312
          %s314 = sand.u32 %s58, 1
          %s315 = smul.addr %s314, 32
          %s316 = scalar_lea.vmem [#allocation3], %s315
          %s317 = smul.u32 2, %s35
          %s318 = smul.u32 2, %s36
          %s320 = ssub.s32 512, 512
          %321 = vsyncadd %s313, %s320
          %s322 = smul.addr %s317, 4
          %s323 = sadd.s32 %s318, %s322
          %s324 = smul.addr %s323, 128
          %s325 = scalar_lea.hbm %s0, %s324
          %s326 = sshll.u32 %s316, 4
          %s327 = int_to_ptr.vmem [resolvable:$true] %s326
          %332 = dma.hbm_to_vmem [thread:$0]  %s325, 512, %s327, %s313, 512, 256, 16
        $region20: #{bayesian_linear_forward.1} parent=15 // pred_fallthru
          _
        // Predicated region
        $region21: #{bayesian_linear_forward.1} parent=15 // pred_check
          %p333 = pneg %p96
        $region22: #{bayesian_linear_forward.1} parent=15 // pred_check_branch
          %335 = sbr.rel (%p333) target = $region24
        $region23: #{bayesian_linear_forward.1} parent=15 // pred_region
          %s336 = sand.u32 %s27, 1
          %s337 = scalar_lea.sflag [#allocation7], %s336
          %s338 = sand.u32 %s86, 1
          %s339 = smul.addr %s338, 512
          %s340 = scalar_lea.vmem [#allocation6], %s339
          %s341 = smul.u32 32, %s34
          %s342 = smul.u32 2, %s36
          %s344 = ssub.s32 8192, 8192
          %345 = vsyncadd %s337, %s344
          %s346 = smul.addr %s341, 4
          %s347 = sadd.s32 %s342, %s346
          %s348 = smul.addr %s347, 128
          %s349 = scalar_lea.hbm %s1, %s348
          %s350 = sshll.u32 %s340, 4
          %s351 = int_to_ptr.vmem [resolvable:$true] %s350
          %356 = dma.hbm_to_vmem [thread:$0]  %s349, 8192, %s351, %s337, 512, 256, 16
        $region24: #{bayesian_linear_forward.1} parent=15 // pred_fallthru
          _
        // Predicated region
        $region25: #{bayesian_linear_forward.1} parent=15 // pred_check
          %p357 = pneg %p124
        $region26: #{bayesian_linear_forward.1} parent=15 // pred_check_branch
          %359 = sbr.rel (%p357) target = $region28
        $region27: #{bayesian_linear_forward.1} parent=15 // pred_region
          %s360 = sand.u32 %s27, 1
          %s361 = scalar_lea.sflag [#allocation7], %s360
          %s362 = sand.u32 %s114, 1
          %s363 = smul.addr %s362, 512
          %s364 = scalar_lea.vmem [#allocation8], %s363
          %s365 = smul.u32 32, %s34
          %s366 = smul.u32 2, %s36
          %s368 = ssub.s32 8192, 8192
          %369 = vsyncadd %s361, %s368
          %s370 = smul.addr %s365, 4
          %s371 = sadd.s32 %s366, %s370
          %s372 = smul.addr %s371, 128
          %s373 = scalar_lea.hbm %s2, %s372
          %s374 = sshll.u32 %s364, 4
          %s375 = int_to_ptr.vmem [resolvable:$true] %s374
          %380 = dma.hbm_to_vmem [thread:$0]  %s373, 8192, %s375, %s361, 512, 256, 16
        $region28: #{bayesian_linear_forward.1} parent=15 // pred_fallthru
          _
        // Predicated region
        $region29: #{bayesian_linear_forward.1} parent=15 // pred_check
          %p381 = pneg %p152
        $region30: #{bayesian_linear_forward.1} parent=15 // pred_check_branch
          %383 = sbr.rel (%p381) target = $region32
        $region31: #{bayesian_linear_forward.1} parent=15 // pred_region
          %s384 = sand.u32 %s27, 1
          %s385 = scalar_lea.sflag [#allocation10], %s384
          %s386 = sand.u32 %s142, 1
          %s387 = smul.addr %s386, 512
          %s388 = scalar_lea.vmem [#allocation9], %s387
          %s389 = smul.u32 32, %s34
          %s390 = smul.u32 2, %s36
          %s392 = ssub.s32 8192, 8192
          %393 = vsyncadd %s385, %s392
          %s394 = smul.addr %s389, 4
          %s395 = sadd.s32 %s390, %s394
          %s396 = smul.addr %s395, 128
          %s397 = scalar_lea.hbm %s3, %s396
          %s398 = sshll.u32 %s388, 4
          %s399 = int_to_ptr.vmem [resolvable:$true] %s398
          %404 = dma.hbm_to_vmem [thread:$0]  %s397, 8192, %s399, %s385, 512, 256, 16
        $region32: #{bayesian_linear_forward.1} parent=15 // pred_fallthru
          _
        // Predicated region
        $region33: #{bayesian_linear_forward.1} parent=15 // pred_check
          %p405 = pneg %p178
        $region34: #{bayesian_linear_forward.1} parent=15 // pred_check_branch
          %407 = sbr.rel (%p405) target = $region36
        $region35: #{bayesian_linear_forward.1} parent=15 // pred_region
          %s408 = smul.u32 2, %s34
          %p409 = scmp.lt.s32.totalorder %s408, 3
          %s410 = scalar_select %p409, %s408, 3
          %s411 = scalar_lea.vmem %s4, %s410
          %s412 = smul.u32 2, %s34
        $region36: #{bayesian_linear_forward.1} parent=15 // pred_fallthru
          _
        // Predicated region
        $region37: #{bayesian_linear_forward.1} parent=15 // pred_check
          %p413 = pneg %p204
        $region38: #{bayesian_linear_forward.1} parent=15 // pred_check_branch
          %415 = sbr.rel (%p413) target = $region40
        $region39: #{bayesian_linear_forward.1} parent=15 // pred_region
          %s416 = smul.u32 2, %s34
          %p417 = scmp.lt.s32.totalorder %s416, 3
          %s418 = scalar_select %p417, %s416, 3
          %s419 = scalar_lea.vmem %s5, %s418
          %s420 = smul.u32 2, %s34
        $region40: #{bayesian_linear_forward.1} parent=15 // pred_fallthru
          _
        // Predicated region
        $region41: #{bayesian_linear_forward.1} parent=15 // pred_check
          %p421 = pneg %p230
        $region42: #{bayesian_linear_forward.1} parent=15 // pred_check_branch
          %423 = sbr.rel (%p421) target = $region44
        $region43: #{bayesian_linear_forward.1} parent=15 // pred_region
          %s424 = sand.u32 %s27, 1
          %s425 = scalar_lea.sflag [#allocation10], %s424
          %s426 = sand.u32 %s220, 1
          %s427 = smul.addr %s426, 2
          %s428 = scalar_lea.vmem [#allocation11], %s427
          %s429 = smul.u32 2, %s34
          %s431 = ssub.s32 32, 32
          %432 = vsyncadd %s425, %s431
          %s433 = smul.addr %s429, 16
          %s434 = scalar_lea.hbm %s6, %s433
          %s436 = sshll.u32 %s428, 4
          %s437 = int_to_ptr.vmem [resolvable:$true] %s436
          %439 = dma.hbm_to_vmem [thread:$0]  %s434, 32, %s437, %s425
        $region44: #{bayesian_linear_forward.1} parent=15 // pred_fallthru
          _
      $region16: #{bayesian_linear_forward.1} parent=5 // pred_fallthru
        _
      %p440 = scmp.le.s32.totalorder 1, %s27
      %p441 = scmp.lt.s32.totalorder %s27, 5
      %p442 = pnand %p440, %p441
      %p443 = pneg %p442
      // Predicated region
      $region45: #{bayesian_linear_forward.1} parent=5 // pred_check
        _
      $region46: #{bayesian_linear_forward.1} parent=5 // pred_check_branch
        %445 = sbr.rel (%p442) target = $region48
      $region47: #{bayesian_linear_forward.1} parent=5 // pred_region
        %s446 = ssub.s32 %s27, 1
        %s447 = sand.u32 %s61, 1
        %s448 = scalar_lea.sflag [#allocation4], %s447
        %s449 = sand.u32 %s61, 1
        %s450 = smul.addr %s449, 32
        %s451 = scalar_lea.vmem [#allocation3], %s450
        // Predicated region
        $region49: #{bayesian_linear_forward.1} parent=47 // pred_check
          %p452 = pneg %p74
        $region50: #{bayesian_linear_forward.1} parent=47 // pred_check_branch
          %454 = sbr.rel (%p452) target = $region52
        $region51: #{bayesian_linear_forward.1} parent=47 // pred_region
          %455 = dma.done %s448, 512
        $region52: #{bayesian_linear_forward.1} parent=47 // pred_fallthru
          _
        %s456 = sand.u32 %s32, 1
        %s457 = scalar_lea.sflag [#allocation7], %s456
        %s458 = sand.u32 %s89, 1
        %s459 = smul.addr %s458, 512
        %s460 = scalar_lea.vmem [#allocation6], %s459
        // Predicated region
        $region53: #{bayesian_linear_forward.1} parent=47 // pred_check
          %p461 = pneg %p102
        $region54: #{bayesian_linear_forward.1} parent=47 // pred_check_branch
          %463 = sbr.rel (%p461) target = $region56
        $region55: #{bayesian_linear_forward.1} parent=47 // pred_region
          %464 = dma.done %s457, 8192
        $region56: #{bayesian_linear_forward.1} parent=47 // pred_fallthru
          _
        %s465 = sand.u32 %s32, 1
        %s466 = scalar_lea.sflag [#allocation7], %s465
        %s467 = sand.u32 %s117, 1
        %s468 = smul.addr %s467, 512
        %s469 = scalar_lea.vmem [#allocation8], %s468
        // Predicated region
        $region57: #{bayesian_linear_forward.1} parent=47 // pred_check
          %p470 = pneg %p130
        $region58: #{bayesian_linear_forward.1} parent=47 // pred_check_branch
          %472 = sbr.rel (%p470) target = $region60
        $region59: #{bayesian_linear_forward.1} parent=47 // pred_region
          %473 = dma.done %s466, 8192
        $region60: #{bayesian_linear_forward.1} parent=47 // pred_fallthru
          _
        %s474 = sand.u32 %s32, 1
        %s475 = scalar_lea.sflag [#allocation10], %s474
        %s476 = sand.u32 %s145, 1
        %s477 = smul.addr %s476, 512
        %s478 = scalar_lea.vmem [#allocation9], %s477
        // Predicated region
        $region61: #{bayesian_linear_forward.1} parent=47 // pred_check
          %p479 = pneg %p158
        $region62: #{bayesian_linear_forward.1} parent=47 // pred_check_branch
          %481 = sbr.rel (%p479) target = $region64
        $region63: #{bayesian_linear_forward.1} parent=47 // pred_region
          %482 = dma.done %s475, 8192
        $region64: #{bayesian_linear_forward.1} parent=47 // pred_fallthru
          _
        %s483 = sand.u32 %s32, 1
        %s484 = scalar_lea.sflag [#allocation10], %s483
        %s485 = sand.u32 %s223, 1
        %s486 = smul.addr %s485, 2
        %s487 = scalar_lea.vmem [#allocation11], %s486
        // Predicated region
        $region65: #{bayesian_linear_forward.1} parent=47 // pred_check
          %p488 = pneg %p236
        $region66: #{bayesian_linear_forward.1} parent=47 // pred_check_branch
          %490 = sbr.rel (%p488) target = $region68
        $region67: #{bayesian_linear_forward.1} parent=47 // pred_region
          %491 = dma.done %s484, 32
        $region68: #{bayesian_linear_forward.1} parent=47 // pred_fallthru
          _
        %s492 = sand.u32 %s61, 1
        %s493 = scalar_lea.sflag [#allocation4], %s492
        %s494 = sand.u32 %s61, 1
        %s495 = smul.addr %s494, 32
        %s496 = scalar_lea.vmem [#allocation3], %s495
        %p497 = pneg %p74
        %p498 = pneg %p71
        %s499 = sand.u32 %s32, 1
        %s500 = scalar_lea.sflag [#allocation7], %s499
        %s501 = sand.u32 %s89, 1
        %s502 = smul.addr %s501, 512
        %s503 = scalar_lea.vmem [#allocation6], %s502
        %p504 = pneg %p102
        %p505 = pneg %p99
        %s506 = sand.u32 %s32, 1
        %s507 = scalar_lea.sflag [#allocation7], %s506
        %s508 = sand.u32 %s117, 1
        %s509 = smul.addr %s508, 512
        %s510 = scalar_lea.vmem [#allocation8], %s509
        %p511 = pneg %p130
        %p512 = pneg %p127
        %s513 = sand.u32 %s32, 1
        %s514 = scalar_lea.sflag [#allocation10], %s513
        %s515 = sand.u32 %s145, 1
        %s516 = smul.addr %s515, 512
        %s517 = scalar_lea.vmem [#allocation9], %s516
        %p518 = pneg %p158
        %p519 = pneg %p155
        %s520 = smul.u32 2, %s37
        %p521 = scmp.lt.s32.totalorder %s520, 3
        %s522 = scalar_select %p521, %s520, 3
        %s523 = scalar_lea.vmem %s4, %s522
        %p524 = pneg %p184
        %p525 = pneg %p181
        %s526 = smul.u32 2, %s37
        %p527 = scmp.lt.s32.totalorder %s526, 3
        %s528 = scalar_select %p527, %s526, 3
        %s529 = scalar_lea.vmem %s5, %s528
        %p530 = pneg %p210
        %p531 = pneg %p207
        %s532 = sand.u32 %s32, 1
        %s533 = scalar_lea.sflag [#allocation10], %s532
        %s534 = sand.u32 %s223, 1
        %s535 = smul.addr %s534, 2
        %s536 = scalar_lea.vmem [#allocation11], %s535
        %p537 = pneg %p236
        %p538 = pneg %p233
        %p539 = pneg %p264
        %p540 = pneg %p261
        %s541 = sand.u32 %s251, 1
        %s542 = scalar_lea.sflag [#allocation5], %s541
        %s543 = sand.u32 %s251, 1
        %s544 = smul.addr %s543, 32
        %s545 = scalar_lea.vmem [#allocation12], %s544
        %p546 = pneg %p290
        %p547 = pneg %p287
        %p548 = scmp.lt.s32.totalorder %s37, 1
        %s549 = scalar_select %p548, %s37, 1
        %s550 = smul.addr %s549, 8
        %s551 = scalar_lea.vmem %s8, %s550
        %s552 = smul.u32 2, %s38
        %s553 = smul.u32 2, %s39
        %s554 = smul.u32 32, %s37
        %s555 = smul.u32 2, %s39
        %s556 = smul.u32 32, %s37
        %s557 = smul.u32 2, %s39
        %s558 = smul.u32 32, %s37
        %s559 = smul.u32 2, %s39
        %s560 = smul.u32 2, %s37
        %p561 = scmp.lt.s32.totalorder %s560, 3
        %s562 = scalar_select %p561, %s560, 3
        %s563 = scalar_lea.vmem %s4, %s562
        %s564 = smul.u32 2, %s37
        %s565 = smul.u32 2, %s37
        %p566 = scmp.lt.s32.totalorder %s565, 3
        %s567 = scalar_select %p566, %s565, 3
        %s568 = scalar_lea.vmem %s5, %s567
        %s569 = smul.u32 2, %s37
        %s570 = smul.u32 2, %s37
        %s571 = smul.u32 2, %s38
        %s572 = smul.u32 2, %s37
        %p573 = scmp.lt.s32.totalorder %s37, 1
        %s574 = scalar_select %p573, %s37, 1
        %s575 = smul.addr %s574, 8
        %s576 = scalar_lea.vmem %s8, %s575
        %v577 = vld [vmem:[%s460] sm:$0xff]
        %v578 = vld [vmem:[%s460 + $0x8] sm:$0xff]
        %v579 = vld [vmem:[%s460 + $0x10] sm:$0xff]
        %v580 = vld [vmem:[%s460 + $0x18] sm:$0xff]
        %v581 = vld [vmem:[%s460 + $0x20] sm:$0xff]
        %v582 = vld [vmem:[%s460 + $0x28] sm:$0xff]
        %v583 = vld [vmem:[%s460 + $0x30] sm:$0xff]
        %v584 = vld [vmem:[%s460 + $0x38] sm:$0xff]
        %v585 = vld [vmem:[%s460 + $0x40] sm:$0xff]
        %v586 = vld [vmem:[%s460 + $0x48] sm:$0xff]
        %v587 = vld [vmem:[%s460 + $0x50] sm:$0xff]
        %v588 = vld [vmem:[%s460 + $0x58] sm:$0xff]
        %v589 = vld [vmem:[%s460 + $0x60] sm:$0xff]
        %v590 = vld [vmem:[%s460 + $0x68] sm:$0xff]
        %v591 = vld [vmem:[%s460 + $0x70] sm:$0xff]
        %v592 = vld [vmem:[%s460 + $0x78] sm:$0xff]
        %v593 = vld [vmem:[%s460 + $0x80] sm:$0xff]
        %v594 = vld [vmem:[%s460 + $0x88] sm:$0xff]
        %v595 = vld [vmem:[%s460 + $0x90] sm:$0xff]
        %v596 = vld [vmem:[%s460 + $0x98] sm:$0xff]
        %v597 = vld [vmem:[%s460 + $0xa0] sm:$0xff]
        %v598 = vld [vmem:[%s460 + $0xa8] sm:$0xff]
        %v599 = vld [vmem:[%s460 + $0xb0] sm:$0xff]
        %v600 = vld [vmem:[%s460 + $0xb8] sm:$0xff]
        %v601 = vld [vmem:[%s460 + $0xc0] sm:$0xff]
        %v602 = vld [vmem:[%s460 + $0xc8] sm:$0xff]
        %v603 = vld [vmem:[%s460 + $0xd0] sm:$0xff]
        %v604 = vld [vmem:[%s460 + $0xd8] sm:$0xff]
        %v605 = vld [vmem:[%s460 + $0xe0] sm:$0xff]
        %v606 = vld [vmem:[%s460 + $0xe8] sm:$0xff]
        %v607 = vld [vmem:[%s460 + $0xf0] sm:$0xff]
        %v608 = vld [vmem:[%s460 + $0xf8] sm:$0xff]
        %v609 = vld [vmem:[%s460 + $0x100] sm:$0xff]
        %v610 = vld [vmem:[%s460 + $0x108] sm:$0xff]
        %v611 = vld [vmem:[%s460 + $0x110] sm:$0xff]
        %v612 = vld [vmem:[%s460 + $0x118] sm:$0xff]
        %v613 = vld [vmem:[%s460 + $0x120] sm:$0xff]
        %v614 = vld [vmem:[%s460 + $0x128] sm:$0xff]
        %v615 = vld [vmem:[%s460 + $0x130] sm:$0xff]
        %v616 = vld [vmem:[%s460 + $0x138] sm:$0xff]
        %v617 = vld [vmem:[%s460 + $0x140] sm:$0xff]
        %v618 = vld [vmem:[%s460 + $0x148] sm:$0xff]
        %v619 = vld [vmem:[%s460 + $0x150] sm:$0xff]
        %v620 = vld [vmem:[%s460 + $0x158] sm:$0xff]
        %v621 = vld [vmem:[%s460 + $0x160] sm:$0xff]
        %v622 = vld [vmem:[%s460 + $0x168] sm:$0xff]
        %v623 = vld [vmem:[%s460 + $0x170] sm:$0xff]
        %v624 = vld [vmem:[%s460 + $0x178] sm:$0xff]
        %v625 = vld [vmem:[%s460 + $0x180] sm:$0xff]
        %v626 = vld [vmem:[%s460 + $0x188] sm:$0xff]
        %v627 = vld [vmem:[%s460 + $0x190] sm:$0xff]
        %v628 = vld [vmem:[%s460 + $0x198] sm:$0xff]
        %v629 = vld [vmem:[%s460 + $0x1a0] sm:$0xff]
        %v630 = vld [vmem:[%s460 + $0x1a8] sm:$0xff]
        %v631 = vld [vmem:[%s460 + $0x1b0] sm:$0xff]
        %v632 = vld [vmem:[%s460 + $0x1b8] sm:$0xff]
        %v633 = vld [vmem:[%s460 + $0x1c0] sm:$0xff]
        %v634 = vld [vmem:[%s460 + $0x1c8] sm:$0xff]
        %v635 = vld [vmem:[%s460 + $0x1d0] sm:$0xff]
        %v636 = vld [vmem:[%s460 + $0x1d8] sm:$0xff]
        %v637 = vld [vmem:[%s460 + $0x1e0] sm:$0xff]
        %v638 = vld [vmem:[%s460 + $0x1e8] sm:$0xff]
        %v639 = vld [vmem:[%s460 + $0x1f0] sm:$0xff]
        %v640 = vld [vmem:[%s460 + $0x1f8] sm:$0xff]
        %v641 = vld [vmem:[%s469] sm:$0xff]
        %v642 = vld [vmem:[%s469 + $0x8] sm:$0xff]
        %v643 = vld [vmem:[%s469 + $0x10] sm:$0xff]
        %v644 = vld [vmem:[%s469 + $0x18] sm:$0xff]
        %v645 = vld [vmem:[%s469 + $0x20] sm:$0xff]
        %v646 = vld [vmem:[%s469 + $0x28] sm:$0xff]
        %v647 = vld [vmem:[%s469 + $0x30] sm:$0xff]
        %v648 = vld [vmem:[%s469 + $0x38] sm:$0xff]
        %v649 = vld [vmem:[%s469 + $0x40] sm:$0xff]
        %v650 = vld [vmem:[%s469 + $0x48] sm:$0xff]
        %v651 = vld [vmem:[%s469 + $0x50] sm:$0xff]
        %v652 = vld [vmem:[%s469 + $0x58] sm:$0xff]
        %v653 = vld [vmem:[%s469 + $0x60] sm:$0xff]
        %v654 = vld [vmem:[%s469 + $0x68] sm:$0xff]
        %v655 = vld [vmem:[%s469 + $0x70] sm:$0xff]
        %v656 = vld [vmem:[%s469 + $0x78] sm:$0xff]
        %v657 = vld [vmem:[%s469 + $0x80] sm:$0xff]
        %v658 = vld [vmem:[%s469 + $0x88] sm:$0xff]
        %v659 = vld [vmem:[%s469 + $0x90] sm:$0xff]
        %v660 = vld [vmem:[%s469 + $0x98] sm:$0xff]
        %v661 = vld [vmem:[%s469 + $0xa0] sm:$0xff]
        %v662 = vld [vmem:[%s469 + $0xa8] sm:$0xff]
        %v663 = vld [vmem:[%s469 + $0xb0] sm:$0xff]
        %v664 = vld [vmem:[%s469 + $0xb8] sm:$0xff]
        %v665 = vld [vmem:[%s469 + $0xc0] sm:$0xff]
        %v666 = vld [vmem:[%s469 + $0xc8] sm:$0xff]
        %v667 = vld [vmem:[%s469 + $0xd0] sm:$0xff]
        %v668 = vld [vmem:[%s469 + $0xd8] sm:$0xff]
        %v669 = vld [vmem:[%s469 + $0xe0] sm:$0xff]
        %v670 = vld [vmem:[%s469 + $0xe8] sm:$0xff]
        %v671 = vld [vmem:[%s469 + $0xf0] sm:$0xff]
        %v672 = vld [vmem:[%s469 + $0xf8] sm:$0xff]
        %v673 = vld [vmem:[%s469 + $0x100] sm:$0xff]
        %v674 = vld [vmem:[%s469 + $0x108] sm:$0xff]
        %v675 = vld [vmem:[%s469 + $0x110] sm:$0xff]
        %v676 = vld [vmem:[%s469 + $0x118] sm:$0xff]
        %v677 = vld [vmem:[%s469 + $0x120] sm:$0xff]
        %v678 = vld [vmem:[%s469 + $0x128] sm:$0xff]
        %v679 = vld [vmem:[%s469 + $0x130] sm:$0xff]
        %v680 = vld [vmem:[%s469 + $0x138] sm:$0xff]
        %v681 = vld [vmem:[%s469 + $0x140] sm:$0xff]
        %v682 = vld [vmem:[%s469 + $0x148] sm:$0xff]
        %v683 = vld [vmem:[%s469 + $0x150] sm:$0xff]
        %v684 = vld [vmem:[%s469 + $0x158] sm:$0xff]
        %v685 = vld [vmem:[%s469 + $0x160] sm:$0xff]
        %v686 = vld [vmem:[%s469 + $0x168] sm:$0xff]
        %v687 = vld [vmem:[%s469 + $0x170] sm:$0xff]
        %v688 = vld [vmem:[%s469 + $0x178] sm:$0xff]
        %v689 = vld [vmem:[%s469 + $0x180] sm:$0xff]
        %v690 = vld [vmem:[%s469 + $0x188] sm:$0xff]
        %v691 = vld [vmem:[%s469 + $0x190] sm:$0xff]
        %v692 = vld [vmem:[%s469 + $0x198] sm:$0xff]
        %v693 = vld [vmem:[%s469 + $0x1a0] sm:$0xff]
        %v694 = vld [vmem:[%s469 + $0x1a8] sm:$0xff]
        %v695 = vld [vmem:[%s469 + $0x1b0] sm:$0xff]
        %v696 = vld [vmem:[%s469 + $0x1b8] sm:$0xff]
        %v697 = vld [vmem:[%s469 + $0x1c0] sm:$0xff]
        %v698 = vld [vmem:[%s469 + $0x1c8] sm:$0xff]
        %v699 = vld [vmem:[%s469 + $0x1d0] sm:$0xff]
        %v700 = vld [vmem:[%s469 + $0x1d8] sm:$0xff]
        %v701 = vld [vmem:[%s469 + $0x1e0] sm:$0xff]
        %v702 = vld [vmem:[%s469 + $0x1e8] sm:$0xff]
        %v703 = vld [vmem:[%s469 + $0x1f0] sm:$0xff]
        %v704 = vld [vmem:[%s469 + $0x1f8] sm:$0xff]
        %v705 = vmul.f32 %v641, 0.5
        %v706 = vmul.f32 %v642, 0.5
        %v707 = vmul.f32 %v643, 0.5
        %v708 = vmul.f32 %v644, 0.5
        %v709 = vmul.f32 %v645, 0.5
        %v710 = vmul.f32 %v646, 0.5
        %v711 = vmul.f32 %v647, 0.5
        %v712 = vmul.f32 %v648, 0.5
        %v713 = vmul.f32 %v649, 0.5
        %v714 = vmul.f32 %v650, 0.5
        %v715 = vmul.f32 %v651, 0.5
        %v716 = vmul.f32 %v652, 0.5
        %v717 = vmul.f32 %v653, 0.5
        %v718 = vmul.f32 %v654, 0.5
        %v719 = vmul.f32 %v655, 0.5
        %v720 = vmul.f32 %v656, 0.5
        %v721 = vmul.f32 %v657, 0.5
        %v722 = vmul.f32 %v658, 0.5
        %v723 = vmul.f32 %v659, 0.5
        %v724 = vmul.f32 %v660, 0.5
        %v725 = vmul.f32 %v661, 0.5
        %v726 = vmul.f32 %v662, 0.5
        %v727 = vmul.f32 %v663, 0.5
        %v728 = vmul.f32 %v664, 0.5
        %v729 = vmul.f32 %v665, 0.5
        %v730 = vmul.f32 %v666, 0.5
        %v731 = vmul.f32 %v667, 0.5
        %v732 = vmul.f32 %v668, 0.5
        %v733 = vmul.f32 %v669, 0.5
        %v734 = vmul.f32 %v670, 0.5
        %v735 = vmul.f32 %v671, 0.5
        %v736 = vmul.f32 %v672, 0.5
        %v737 = vmul.f32 %v673, 0.5
        %v738 = vmul.f32 %v674, 0.5
        %v739 = vmul.f32 %v675, 0.5
        %v740 = vmul.f32 %v676, 0.5
        %v741 = vmul.f32 %v677, 0.5
        %v742 = vmul.f32 %v678, 0.5
        %v743 = vmul.f32 %v679, 0.5
        %v744 = vmul.f32 %v680, 0.5
        %v745 = vmul.f32 %v681, 0.5
        %v746 = vmul.f32 %v682, 0.5
        %v747 = vmul.f32 %v683, 0.5
        %v748 = vmul.f32 %v684, 0.5
        %v749 = vmul.f32 %v685, 0.5
        %v750 = vmul.f32 %v686, 0.5
        %v751 = vmul.f32 %v687, 0.5
        %v752 = vmul.f32 %v688, 0.5
        %v753 = vmul.f32 %v689, 0.5
        %v754 = vmul.f32 %v690, 0.5
        %v755 = vmul.f32 %v691, 0.5
        %v756 = vmul.f32 %v692, 0.5
        %v757 = vmul.f32 %v693, 0.5
        %v758 = vmul.f32 %v694, 0.5
        %v759 = vmul.f32 %v695, 0.5
        %v760 = vmul.f32 %v696, 0.5
        %v761 = vmul.f32 %v697, 0.5
        %v762 = vmul.f32 %v698, 0.5
        %v763 = vmul.f32 %v699, 0.5
        %v764 = vmul.f32 %v700, 0.5
        %v765 = vmul.f32 %v701, 0.5
        %v766 = vmul.f32 %v702, 0.5
        %v767 = vmul.f32 %v703, 0.5
        %v768 = vmul.f32 %v704, 0.5
        %v769 = vmul.f32 %v705, 1.442695
        %v770 = vpow.pop %v769
        %v771 = vmul.f32 %v706, 1.442695
        %v772 = vpow.pop %v771
        %v773 = vmul.f32 %v707, 1.442695
        %v774 = vpow.pop %v773
        %v775 = vmul.f32 %v708, 1.442695
        %v776 = vpow.pop %v775
        %v777 = vmul.f32 %v709, 1.442695
        %v778 = vpow.pop %v777
        %v779 = vmul.f32 %v710, 1.442695
        %v780 = vpow.pop %v779
        %v781 = vmul.f32 %v711, 1.442695
        %v782 = vpow.pop %v781
        %v783 = vmul.f32 %v712, 1.442695
        %v784 = vpow.pop %v783
        %v785 = vmul.f32 %v713, 1.442695
        %v786 = vpow.pop %v785
        %v787 = vmul.f32 %v714, 1.442695
        %v788 = vpow.pop %v787
        %v789 = vmul.f32 %v715, 1.442695
        %v790 = vpow.pop %v789
        %v791 = vmul.f32 %v716, 1.442695
        %v792 = vpow.pop %v791
        %v793 = vmul.f32 %v717, 1.442695
        %v794 = vpow.pop %v793
        %v795 = vmul.f32 %v718, 1.442695
        %v796 = vpow.pop %v795
        %v797 = vmul.f32 %v719, 1.442695
        %v798 = vpow.pop %v797
        %v799 = vmul.f32 %v720, 1.442695
        %v800 = vpow.pop %v799
        %v801 = vmul.f32 %v721, 1.442695
        %v802 = vpow.pop %v801
        %v803 = vmul.f32 %v722, 1.442695
        %v804 = vpow.pop %v803
        %v805 = vmul.f32 %v723, 1.442695
        %v806 = vpow.pop %v805
        %v807 = vmul.f32 %v724, 1.442695
        %v808 = vpow.pop %v807
        %v809 = vmul.f32 %v725, 1.442695
        %v810 = vpow.pop %v809
        %v811 = vmul.f32 %v726, 1.442695
        %v812 = vpow.pop %v811
        %v813 = vmul.f32 %v727, 1.442695
        %v814 = vpow.pop %v813
        %v815 = vmul.f32 %v728, 1.442695
        %v816 = vpow.pop %v815
        %v817 = vmul.f32 %v729, 1.442695
        %v818 = vpow.pop %v817
        %v819 = vmul.f32 %v730, 1.442695
        %v820 = vpow.pop %v819
        %v821 = vmul.f32 %v731, 1.442695
        %v822 = vpow.pop %v821
        %v823 = vmul.f32 %v732, 1.442695
        %v824 = vpow.pop %v823
        %v825 = vmul.f32 %v733, 1.442695
        %v826 = vpow.pop %v825
        %v827 = vmul.f32 %v734, 1.442695
        %v828 = vpow.pop %v827
        %v829 = vmul.f32 %v735, 1.442695
        %v830 = vpow.pop %v829
        %v831 = vmul.f32 %v736, 1.442695
        %v832 = vpow.pop %v831
        %v833 = vmul.f32 %v737, 1.442695
        %v834 = vpow.pop %v833
        %v835 = vmul.f32 %v738, 1.442695
        %v836 = vpow.pop %v835
        %v837 = vmul.f32 %v739, 1.442695
        %v838 = vpow.pop %v837
        %v839 = vmul.f32 %v740, 1.442695
        %v840 = vpow.pop %v839
        %v841 = vmul.f32 %v741, 1.442695
        %v842 = vpow.pop %v841
        %v843 = vmul.f32 %v742, 1.442695
        %v844 = vpow.pop %v843
        %v845 = vmul.f32 %v743, 1.442695
        %v846 = vpow.pop %v845
        %v847 = vmul.f32 %v744, 1.442695
        %v848 = vpow.pop %v847
        %v849 = vmul.f32 %v745, 1.442695
        %v850 = vpow.pop %v849
        %v851 = vmul.f32 %v746, 1.442695
        %v852 = vpow.pop %v851
        %v853 = vmul.f32 %v747, 1.442695
        %v854 = vpow.pop %v853
        %v855 = vmul.f32 %v748, 1.442695
        %v856 = vpow.pop %v855
        %v857 = vmul.f32 %v749, 1.442695
        %v858 = vpow.pop %v857
        %v859 = vmul.f32 %v750, 1.442695
        %v860 = vpow.pop %v859
        %v861 = vmul.f32 %v751, 1.442695
        %v862 = vpow.pop %v861
        %v863 = vmul.f32 %v752, 1.442695
        %v864 = vpow.pop %v863
        %v865 = vmul.f32 %v753, 1.442695
        %v866 = vpow.pop %v865
        %v867 = vmul.f32 %v754, 1.442695
        %v868 = vpow.pop %v867
        %v869 = vmul.f32 %v755, 1.442695
        %v870 = vpow.pop %v869
        %v871 = vmul.f32 %v756, 1.442695
        %v872 = vpow.pop %v871
        %v873 = vmul.f32 %v757, 1.442695
        %v874 = vpow.pop %v873
        %v875 = vmul.f32 %v758, 1.442695
        %v876 = vpow.pop %v875
        %v877 = vmul.f32 %v759, 1.442695
        %v878 = vpow.pop %v877
        %v879 = vmul.f32 %v760, 1.442695
        %v880 = vpow.pop %v879
        %v881 = vmul.f32 %v761, 1.442695
        %v882 = vpow.pop %v881
        %v883 = vmul.f32 %v762, 1.442695
        %v884 = vpow.pop %v883
        %v885 = vmul.f32 %v763, 1.442695
        %v886 = vpow.pop %v885
        %v887 = vmul.f32 %v764, 1.442695
        %v888 = vpow.pop %v887
        %v889 = vmul.f32 %v765, 1.442695
        %v890 = vpow.pop %v889
        %v891 = vmul.f32 %v766, 1.442695
        %v892 = vpow.pop %v891
        %v893 = vmul.f32 %v767, 1.442695
        %v894 = vpow.pop %v893
        %v895 = vmul.f32 %v768, 1.442695
        %v896 = vpow.pop %v895
        %v897 = vld [vmem:[%s478] sm:$0xff]
        %v898 = vld [vmem:[%s478 + $0x8] sm:$0xff]
        %v899 = vld [vmem:[%s478 + $0x10] sm:$0xff]
        %v900 = vld [vmem:[%s478 + $0x18] sm:$0xff]
        %v901 = vld [vmem:[%s478 + $0x20] sm:$0xff]
        %v902 = vld [vmem:[%s478 + $0x28] sm:$0xff]
        %v903 = vld [vmem:[%s478 + $0x30] sm:$0xff]
        %v904 = vld [vmem:[%s478 + $0x38] sm:$0xff]
        %v905 = vld [vmem:[%s478 + $0x40] sm:$0xff]
        %v906 = vld [vmem:[%s478 + $0x48] sm:$0xff]
        %v907 = vld [vmem:[%s478 + $0x50] sm:$0xff]
        %v908 = vld [vmem:[%s478 + $0x58] sm:$0xff]
        %v909 = vld [vmem:[%s478 + $0x60] sm:$0xff]
        %v910 = vld [vmem:[%s478 + $0x68] sm:$0xff]
        %v911 = vld [vmem:[%s478 + $0x70] sm:$0xff]
        %v912 = vld [vmem:[%s478 + $0x78] sm:$0xff]
        %v913 = vld [vmem:[%s478 + $0x80] sm:$0xff]
        %v914 = vld [vmem:[%s478 + $0x88] sm:$0xff]
        %v915 = vld [vmem:[%s478 + $0x90] sm:$0xff]
        %v916 = vld [vmem:[%s478 + $0x98] sm:$0xff]
        %v917 = vld [vmem:[%s478 + $0xa0] sm:$0xff]
        %v918 = vld [vmem:[%s478 + $0xa8] sm:$0xff]
        %v919 = vld [vmem:[%s478 + $0xb0] sm:$0xff]
        %v920 = vld [vmem:[%s478 + $0xb8] sm:$0xff]
        %v921 = vld [vmem:[%s478 + $0xc0] sm:$0xff]
        %v922 = vld [vmem:[%s478 + $0xc8] sm:$0xff]
        %v923 = vld [vmem:[%s478 + $0xd0] sm:$0xff]
        %v924 = vld [vmem:[%s478 + $0xd8] sm:$0xff]
        %v925 = vld [vmem:[%s478 + $0xe0] sm:$0xff]
        %v926 = vld [vmem:[%s478 + $0xe8] sm:$0xff]
        %v927 = vld [vmem:[%s478 + $0xf0] sm:$0xff]
        %v928 = vld [vmem:[%s478 + $0xf8] sm:$0xff]
        %v929 = vld [vmem:[%s478 + $0x100] sm:$0xff]
        %v930 = vld [vmem:[%s478 + $0x108] sm:$0xff]
        %v931 = vld [vmem:[%s478 + $0x110] sm:$0xff]
        %v932 = vld [vmem:[%s478 + $0x118] sm:$0xff]
        %v933 = vld [vmem:[%s478 + $0x120] sm:$0xff]
        %v934 = vld [vmem:[%s478 + $0x128] sm:$0xff]
        %v935 = vld [vmem:[%s478 + $0x130] sm:$0xff]
        %v936 = vld [vmem:[%s478 + $0x138] sm:$0xff]
        %v937 = vld [vmem:[%s478 + $0x140] sm:$0xff]
        %v938 = vld [vmem:[%s478 + $0x148] sm:$0xff]
        %v939 = vld [vmem:[%s478 + $0x150] sm:$0xff]
        %v940 = vld [vmem:[%s478 + $0x158] sm:$0xff]
        %v941 = vld [vmem:[%s478 + $0x160] sm:$0xff]
        %v942 = vld [vmem:[%s478 + $0x168] sm:$0xff]
        %v943 = vld [vmem:[%s478 + $0x170] sm:$0xff]
        %v944 = vld [vmem:[%s478 + $0x178] sm:$0xff]
        %v945 = vld [vmem:[%s478 + $0x180] sm:$0xff]
        %v946 = vld [vmem:[%s478 + $0x188] sm:$0xff]
        %v947 = vld [vmem:[%s478 + $0x190] sm:$0xff]
        %v948 = vld [vmem:[%s478 + $0x198] sm:$0xff]
        %v949 = vld [vmem:[%s478 + $0x1a0] sm:$0xff]
        %v950 = vld [vmem:[%s478 + $0x1a8] sm:$0xff]
        %v951 = vld [vmem:[%s478 + $0x1b0] sm:$0xff]
        %v952 = vld [vmem:[%s478 + $0x1b8] sm:$0xff]
        %v953 = vld [vmem:[%s478 + $0x1c0] sm:$0xff]
        %v954 = vld [vmem:[%s478 + $0x1c8] sm:$0xff]
        %v955 = vld [vmem:[%s478 + $0x1d0] sm:$0xff]
        %v956 = vld [vmem:[%s478 + $0x1d8] sm:$0xff]
        %v957 = vld [vmem:[%s478 + $0x1e0] sm:$0xff]
        %v958 = vld [vmem:[%s478 + $0x1e8] sm:$0xff]
        %v959 = vld [vmem:[%s478 + $0x1f0] sm:$0xff]
        %v960 = vld [vmem:[%s478 + $0x1f8] sm:$0xff]
        %v961 = vmul.f32 %v770, %v897
        %v962 = vmul.f32 %v772, %v898
        %v963 = vmul.f32 %v774, %v899
        %v964 = vmul.f32 %v776, %v900
        %v965 = vmul.f32 %v778, %v901
        %v966 = vmul.f32 %v780, %v902
        %v967 = vmul.f32 %v782, %v903
        %v968 = vmul.f32 %v784, %v904
        %v969 = vmul.f32 %v786, %v905
        %v970 = vmul.f32 %v788, %v906
        %v971 = vmul.f32 %v790, %v907
        %v972 = vmul.f32 %v792, %v908
        %v973 = vmul.f32 %v794, %v909
        %v974 = vmul.f32 %v796, %v910
        %v975 = vmul.f32 %v798, %v911
        %v976 = vmul.f32 %v800, %v912
        %v977 = vmul.f32 %v802, %v913
        %v978 = vmul.f32 %v804, %v914
        %v979 = vmul.f32 %v806, %v915
        %v980 = vmul.f32 %v808, %v916
        %v981 = vmul.f32 %v810, %v917
        %v982 = vmul.f32 %v812, %v918
        %v983 = vmul.f32 %v814, %v919
        %v984 = vmul.f32 %v816, %v920
        %v985 = vmul.f32 %v818, %v921
        %v986 = vmul.f32 %v820, %v922
        %v987 = vmul.f32 %v822, %v923
        %v988 = vmul.f32 %v824, %v924
        %v989 = vmul.f32 %v826, %v925
        %v990 = vmul.f32 %v828, %v926
        %v991 = vmul.f32 %v830, %v927
        %v992 = vmul.f32 %v832, %v928
        %v993 = vmul.f32 %v834, %v929
        %v994 = vmul.f32 %v836, %v930
        %v995 = vmul.f32 %v838, %v931
        %v996 = vmul.f32 %v840, %v932
        %v997 = vmul.f32 %v842, %v933
        %v998 = vmul.f32 %v844, %v934
        %v999 = vmul.f32 %v846, %v935
        %v1000 = vmul.f32 %v848, %v936
        %v1001 = vmul.f32 %v850, %v937
        %v1002 = vmul.f32 %v852, %v938
        %v1003 = vmul.f32 %v854, %v939
        %v1004 = vmul.f32 %v856, %v940
        %v1005 = vmul.f32 %v858, %v941
        %v1006 = vmul.f32 %v860, %v942
        %v1007 = vmul.f32 %v862, %v943
        %v1008 = vmul.f32 %v864, %v944
        %v1009 = vmul.f32 %v866, %v945
        %v1010 = vmul.f32 %v868, %v946
        %v1011 = vmul.f32 %v870, %v947
        %v1012 = vmul.f32 %v872, %v948
        %v1013 = vmul.f32 %v874, %v949
        %v1014 = vmul.f32 %v876, %v950
        %v1015 = vmul.f32 %v878, %v951
        %v1016 = vmul.f32 %v880, %v952
        %v1017 = vmul.f32 %v882, %v953
        %v1018 = vmul.f32 %v884, %v954
        %v1019 = vmul.f32 %v886, %v955
        %v1020 = vmul.f32 %v888, %v956
        %v1021 = vmul.f32 %v890, %v957
        %v1022 = vmul.f32 %v892, %v958
        %v1023 = vmul.f32 %v894, %v959
        %v1024 = vmul.f32 %v896, %v960
        %v1025 = vadd.f32 %v577, %v961
        %v1026 = vadd.f32 %v578, %v962
        %v1027 = vadd.f32 %v579, %v963
        %v1028 = vadd.f32 %v580, %v964
        %v1029 = vadd.f32 %v581, %v965
        %v1030 = vadd.f32 %v582, %v966
        %v1031 = vadd.f32 %v583, %v967
        %v1032 = vadd.f32 %v584, %v968
        %v1033 = vadd.f32 %v585, %v969
        %v1034 = vadd.f32 %v586, %v970
        %v1035 = vadd.f32 %v587, %v971
        %v1036 = vadd.f32 %v588, %v972
        %v1037 = vadd.f32 %v589, %v973
        %v1038 = vadd.f32 %v590, %v974
        %v1039 = vadd.f32 %v591, %v975
        %v1040 = vadd.f32 %v592, %v976
        %v1041 = vadd.f32 %v593, %v977
        %v1042 = vadd.f32 %v594, %v978
        %v1043 = vadd.f32 %v595, %v979
        %v1044 = vadd.f32 %v596, %v980
        %v1045 = vadd.f32 %v597, %v981
        %v1046 = vadd.f32 %v598, %v982
        %v1047 = vadd.f32 %v599, %v983
        %v1048 = vadd.f32 %v600, %v984
        %v1049 = vadd.f32 %v601, %v985
        %v1050 = vadd.f32 %v602, %v986
        %v1051 = vadd.f32 %v603, %v987
        %v1052 = vadd.f32 %v604, %v988
        %v1053 = vadd.f32 %v605, %v989
        %v1054 = vadd.f32 %v606, %v990
        %v1055 = vadd.f32 %v607, %v991
        %v1056 = vadd.f32 %v608, %v992
        %v1057 = vadd.f32 %v609, %v993
        %v1058 = vadd.f32 %v610, %v994
        %v1059 = vadd.f32 %v611, %v995
        %v1060 = vadd.f32 %v612, %v996
        %v1061 = vadd.f32 %v613, %v997
        %v1062 = vadd.f32 %v614, %v998
        %v1063 = vadd.f32 %v615, %v999
        %v1064 = vadd.f32 %v616, %v1000
        %v1065 = vadd.f32 %v617, %v1001
        %v1066 = vadd.f32 %v618, %v1002
        %v1067 = vadd.f32 %v619, %v1003
        %v1068 = vadd.f32 %v620, %v1004
        %v1069 = vadd.f32 %v621, %v1005
        %v1070 = vadd.f32 %v622, %v1006
        %v1071 = vadd.f32 %v623, %v1007
        %v1072 = vadd.f32 %v624, %v1008
        %v1073 = vadd.f32 %v625, %v1009
        %v1074 = vadd.f32 %v626, %v1010
        %v1075 = vadd.f32 %v627, %v1011
        %v1076 = vadd.f32 %v628, %v1012
        %v1077 = vadd.f32 %v629, %v1013
        %v1078 = vadd.f32 %v630, %v1014
        %v1079 = vadd.f32 %v631, %v1015
        %v1080 = vadd.f32 %v632, %v1016
        %v1081 = vadd.f32 %v633, %v1017
        %v1082 = vadd.f32 %v634, %v1018
        %v1083 = vadd.f32 %v635, %v1019
        %v1084 = vadd.f32 %v636, %v1020
        %v1085 = vadd.f32 %v637, %v1021
        %v1086 = vadd.f32 %v638, %v1022
        %v1087 = vadd.f32 %v639, %v1023
        %v1088 = vadd.f32 %v640, %v1024
        %p1089 = scmp.eq.s32.totalorder %s39, 0
        // Predicated region
        $region69: #{bayesian_linear_forward.1} parent=47 // pred_check
          %p1090 = pneg %p1089
        $region70: #{bayesian_linear_forward.1} parent=47 // pred_check_branch
          %1092 = sbr.rel (%p1090) target = $region72
        $region71: #{bayesian_linear_forward.1} parent=47 // pred_region
          %1093 = vst [vmem:[#allocation2] sm:$0xff] 0.0
          %1094 = vst [vmem:[#allocation2 + $0x8] sm:$0xff] 0.0
          %1095 = vst [vmem:[#allocation2 + $0x10] sm:$0xff] 0.0
          %1096 = vst [vmem:[#allocation2 + $0x18] sm:$0xff] 0.0
        $region72: #{bayesian_linear_forward.1} parent=47 // pred_fallthru
          _
        %v1097 = vld [vmem:[%s451] sm:$0xff]
        %v1098 = vld [vmem:[%s451 + $0x8] sm:$0xff]
        %v1099 = vld [vmem:[%s451 + $0x10] sm:$0xff]
        %v1100 = vld [vmem:[%s451 + $0x18] sm:$0xff]
        %v1101 = vld [vmem:[#allocation2] sm:$0xff]
        %v1102 = vld [vmem:[#allocation2 + $0x8] sm:$0xff]
        %v1103 = vld [vmem:[#allocation2 + $0x10] sm:$0xff]
        %v1104 = vld [vmem:[#allocation2 + $0x18] sm:$0xff]
        %1105 = vmatprep.subr.mxu0 %v1026
        %1106 = vmatpush1.xpose.msra.mxu0 %v1025
        %1107 = vmatprep.subr.mxu0 %v1028
        %1108 = vmatpush1.xpose.msra.mxu0 %v1027
        %1109 = vmatprep.subr.mxu0 %v1030
        %1110 = vmatpush1.xpose.msra.mxu0 %v1029
        %1111 = vmatprep.subr.mxu0 %v1032
        %1112 = vmatpush1.xpose.msra.mxu0 %v1031
        %1113 = vmatprep.subr.mxu0 %v1034
        %1114 = vmatpush1.xpose.msra.mxu0 %v1033
        %1115 = vmatprep.subr.mxu0 %v1036
        %1116 = vmatpush1.xpose.msra.mxu0 %v1035
        %1117 = vmatprep.subr.mxu0 %v1038
        %1118 = vmatpush1.xpose.msra.mxu0 %v1037
        %1119 = vmatprep.subr.mxu0 %v1040
        %1120 = vmatpush1.xpose.msra.mxu0 %v1039
        %1121 = vmatprep.subr.mxu0 %v1042
        %1122 = vmatpush1.xpose.msra.mxu0 %v1041
        %1123 = vmatprep.subr.mxu0 %v1044
        %1124 = vmatpush1.xpose.msra.mxu0 %v1043
        %1125 = vmatprep.subr.mxu0 %v1046
        %1126 = vmatpush1.xpose.msra.mxu0 %v1045
        %1127 = vmatprep.subr.mxu0 %v1048
        %1128 = vmatpush1.xpose.msra.mxu0 %v1047
        %1129 = vmatprep.subr.mxu0 %v1050
        %1130 = vmatpush1.xpose.msra.mxu0 %v1049
        %1131 = vmatprep.subr.mxu0 %v1052
        %1132 = vmatpush1.xpose.msra.mxu0 %v1051
        %1133 = vmatprep.subr.mxu0 %v1054
        %1134 = vmatpush1.xpose.msra.mxu0 %v1053
        %1135 = vmatprep.subr.mxu0 %v1056
        %1136 = vmatpush1.xpose.msra.mxu0 %v1055
        %1137 = vmatprep.subr.mxu0 %v1058
        %1138 = vmatpush1.xpose.msra.mxu0 %v1057
        %1139 = vmatprep.subr.mxu0 %v1060
        %1140 = vmatpush1.xpose.msra.mxu0 %v1059
        %1141 = vmatprep.subr.mxu0 %v1062
        %1142 = vmatpush1.xpose.msra.mxu0 %v1061
        %1143 = vmatprep.subr.mxu0 %v1064
        %1144 = vmatpush1.xpose.msra.mxu0 %v1063
        %1145 = vmatprep.subr.mxu0 %v1066
        %1146 = vmatpush1.xpose.msra.mxu0 %v1065
        %1147 = vmatprep.subr.mxu0 %v1068
        %1148 = vmatpush1.xpose.msra.mxu0 %v1067
        %1149 = vmatprep.subr.mxu0 %v1070
        %1150 = vmatpush1.xpose.msra.mxu0 %v1069
        %1151 = vmatprep.subr.mxu0 %v1072
        %1152 = vmatpush1.xpose.msra.mxu0 %v1071
        %1153 = vmatprep.subr.mxu0 %v1074
        %1154 = vmatpush1.xpose.msra.mxu0 %v1073
        %1155 = vmatprep.subr.mxu0 %v1076
        %1156 = vmatpush1.xpose.msra.mxu0 %v1075
        %1157 = vmatprep.subr.mxu0 %v1078
        %1158 = vmatpush1.xpose.msra.mxu0 %v1077
        %1159 = vmatprep.subr.mxu0 %v1080
        %1160 = vmatpush1.xpose.msra.mxu0 %v1079
        %1161 = vmatprep.subr.mxu0 %v1082
        %1162 = vmatpush1.xpose.msra.mxu0 %v1081
        %1163 = vmatprep.subr.mxu0 %v1084
        %1164 = vmatpush1.xpose.msra.mxu0 %v1083
        %1165 = vmatprep.subr.mxu0 %v1086
        %1166 = vmatpush1.xpose.msra.mxu0 %v1085
        %1167 = vmatprep.subr.mxu0 %v1088
        %1168 = vmatpush1.xpose.msra.mxu0 %v1087
        %1169 = vmatprep.mubr.f32.mxu0 %v1098
        %1170 = vmatmul.mubr.f32.gmra.mrb[0].mxu0 %v1097
        %v1171 = vpop.f32.mrb[0].mxu0
        %v1172 = vadd.f32 0.0, %v1171
        %v1173 = vpop.f32.mrb[0].mxu0
        %v1174 = vadd.f32 0.0, %v1173
        %1175 = vmatprep.mubr.f32.mxu0 %v1100
        %1176 = vmatmul.mubr.f32.gmra.mrb[0].mxu0 %v1099
        %v1177 = vpop.f32.mrb[0].mxu0
        %v1178 = vadd.f32 0.0, %v1177
        %v1179 = vpop.f32.mrb[0].mxu0
        %v1180 = vadd.f32 0.0, %v1179
        %1181 = vdwg.mxu0
        %v1182 = vadd.f32 %v1101, %v1172
        %v1183 = vadd.f32 %v1102, %v1174
        %v1184 = vadd.f32 %v1103, %v1178
        %v1185 = vadd.f32 %v1104, %v1180
        %1186 = vst [vmem:[#allocation2] sm:$0xff] %v1182
        %1187 = vst [vmem:[#allocation2 + $0x8] sm:$0xff] %v1183
        %1188 = vst [vmem:[#allocation2 + $0x10] sm:$0xff] %v1184
        %1189 = vst [vmem:[#allocation2 + $0x18] sm:$0xff] %v1185
        %p1190 = scmp.eq.s32.totalorder %s38, 0
        // Predicated region
        $region73: #{bayesian_linear_forward.1} parent=47 // pred_check
          %p1191 = pneg %p1190
        $region74: #{bayesian_linear_forward.1} parent=47 // pred_check_branch
          %1193 = sbr.rel (%p1191) target = $region76
        $region75: #{bayesian_linear_forward.1} parent=47 // pred_region
          %v1194 = vmul.f32 %v770, %v770
          %v1195 = vmul.f32 %v772, %v772
          %v1196 = vmul.f32 %v774, %v774
          %v1197 = vmul.f32 %v776, %v776
          %v1198 = vmul.f32 %v778, %v778
          %v1199 = vmul.f32 %v780, %v780
          %v1200 = vmul.f32 %v782, %v782
          %v1201 = vmul.f32 %v784, %v784
          %v1202 = vmul.f32 %v786, %v786
          %v1203 = vmul.f32 %v788, %v788
          %v1204 = vmul.f32 %v790, %v790
          %v1205 = vmul.f32 %v792, %v792
          %v1206 = vmul.f32 %v794, %v794
          %v1207 = vmul.f32 %v796, %v796
          %v1208 = vmul.f32 %v798, %v798
          %v1209 = vmul.f32 %v800, %v800
          %v1210 = vmul.f32 %v802, %v802
          %v1211 = vmul.f32 %v804, %v804
          %v1212 = vmul.f32 %v806, %v806
          %v1213 = vmul.f32 %v808, %v808
          %v1214 = vmul.f32 %v810, %v810
          %v1215 = vmul.f32 %v812, %v812
          %v1216 = vmul.f32 %v814, %v814
          %v1217 = vmul.f32 %v816, %v816
          %v1218 = vmul.f32 %v818, %v818
          %v1219 = vmul.f32 %v820, %v820
          %v1220 = vmul.f32 %v822, %v822
          %v1221 = vmul.f32 %v824, %v824
          %v1222 = vmul.f32 %v826, %v826
          %v1223 = vmul.f32 %v828, %v828
          %v1224 = vmul.f32 %v830, %v830
          %v1225 = vmul.f32 %v832, %v832
          %v1226 = vmul.f32 %v834, %v834
          %v1227 = vmul.f32 %v836, %v836
          %v1228 = vmul.f32 %v838, %v838
          %v1229 = vmul.f32 %v840, %v840
          %v1230 = vmul.f32 %v842, %v842
          %v1231 = vmul.f32 %v844, %v844
          %v1232 = vmul.f32 %v846, %v846
          %v1233 = vmul.f32 %v848, %v848
          %v1234 = vmul.f32 %v850, %v850
          %v1235 = vmul.f32 %v852, %v852
          %v1236 = vmul.f32 %v854, %v854
          %v1237 = vmul.f32 %v856, %v856
          %v1238 = vmul.f32 %v858, %v858
          %v1239 = vmul.f32 %v860, %v860
          %v1240 = vmul.f32 %v862, %v862
          %v1241 = vmul.f32 %v864, %v864
          %v1242 = vmul.f32 %v866, %v866
          %v1243 = vmul.f32 %v868, %v868
          %v1244 = vmul.f32 %v870, %v870
          %v1245 = vmul.f32 %v872, %v872
          %v1246 = vmul.f32 %v874, %v874
          %v1247 = vmul.f32 %v876, %v876
          %v1248 = vmul.f32 %v878, %v878
          %v1249 = vmul.f32 %v880, %v880
          %v1250 = vmul.f32 %v882, %v882
          %v1251 = vmul.f32 %v884, %v884
          %v1252 = vmul.f32 %v886, %v886
          %v1253 = vmul.f32 %v888, %v888
          %v1254 = vmul.f32 %v890, %v890
          %v1255 = vmul.f32 %v892, %v892
          %v1256 = vmul.f32 %v894, %v894
          %v1257 = vmul.f32 %v896, %v896
          %v1258 = vmul.f32 %v577, %v577
          %v1259 = vmul.f32 %v578, %v578
          %v1260 = vmul.f32 %v579, %v579
          %v1261 = vmul.f32 %v580, %v580
          %v1262 = vmul.f32 %v581, %v581
          %v1263 = vmul.f32 %v582, %v582
          %v1264 = vmul.f32 %v583, %v583
          %v1265 = vmul.f32 %v584, %v584
          %v1266 = vmul.f32 %v585, %v585
          %v1267 = vmul.f32 %v586, %v586
          %v1268 = vmul.f32 %v587, %v587
          %v1269 = vmul.f32 %v588, %v588
          %v1270 = vmul.f32 %v589, %v589
          %v1271 = vmul.f32 %v590, %v590
          %v1272 = vmul.f32 %v591, %v591
          %v1273 = vmul.f32 %v592, %v592
          %v1274 = vmul.f32 %v593, %v593
          %v1275 = vmul.f32 %v594, %v594
          %v1276 = vmul.f32 %v595, %v595
          %v1277 = vmul.f32 %v596, %v596
          %v1278 = vmul.f32 %v597, %v597
          %v1279 = vmul.f32 %v598, %v598
          %v1280 = vmul.f32 %v599, %v599
          %v1281 = vmul.f32 %v600, %v600
          %v1282 = vmul.f32 %v601, %v601
          %v1283 = vmul.f32 %v602, %v602
          %v1284 = vmul.f32 %v603, %v603
          %v1285 = vmul.f32 %v604, %v604
          %v1286 = vmul.f32 %v605, %v605
          %v1287 = vmul.f32 %v606, %v606
          %v1288 = vmul.f32 %v607, %v607
          %v1289 = vmul.f32 %v608, %v608
          %v1290 = vmul.f32 %v609, %v609
          %v1291 = vmul.f32 %v610, %v610
          %v1292 = vmul.f32 %v611, %v611
          %v1293 = vmul.f32 %v612, %v612
          %v1294 = vmul.f32 %v613, %v613
          %v1295 = vmul.f32 %v614, %v614
          %v1296 = vmul.f32 %v615, %v615
          %v1297 = vmul.f32 %v616, %v616
          %v1298 = vmul.f32 %v617, %v617
          %v1299 = vmul.f32 %v618, %v618
          %v1300 = vmul.f32 %v619, %v619
          %v1301 = vmul.f32 %v620, %v620
          %v1302 = vmul.f32 %v621, %v621
          %v1303 = vmul.f32 %v622, %v622
          %v1304 = vmul.f32 %v623, %v623
          %v1305 = vmul.f32 %v624, %v624
          %v1306 = vmul.f32 %v625, %v625
          %v1307 = vmul.f32 %v626, %v626
          %v1308 = vmul.f32 %v627, %v627
          %v1309 = vmul.f32 %v628, %v628
          %v1310 = vmul.f32 %v629, %v629
          %v1311 = vmul.f32 %v630, %v630
          %v1312 = vmul.f32 %v631, %v631
          %v1313 = vmul.f32 %v632, %v632
          %v1314 = vmul.f32 %v633, %v633
          %v1315 = vmul.f32 %v634, %v634
          %v1316 = vmul.f32 %v635, %v635
          %v1317 = vmul.f32 %v636, %v636
          %v1318 = vmul.f32 %v637, %v637
          %v1319 = vmul.f32 %v638, %v638
          %v1320 = vmul.f32 %v639, %v639
          %v1321 = vmul.f32 %v640, %v640
          %v1322 = vadd.f32 %v1194, %v1258
          %v1323 = vadd.f32 %v1195, %v1259
          %v1324 = vadd.f32 %v1196, %v1260
          %v1325 = vadd.f32 %v1197, %v1261
          %v1326 = vadd.f32 %v1198, %v1262
          %v1327 = vadd.f32 %v1199, %v1263
          %v1328 = vadd.f32 %v1200, %v1264
          %v1329 = vadd.f32 %v1201, %v1265
          %v1330 = vadd.f32 %v1202, %v1266
          %v1331 = vadd.f32 %v1203, %v1267
          %v1332 = vadd.f32 %v1204, %v1268
          %v1333 = vadd.f32 %v1205, %v1269
          %v1334 = vadd.f32 %v1206, %v1270
          %v1335 = vadd.f32 %v1207, %v1271
          %v1336 = vadd.f32 %v1208, %v1272
          %v1337 = vadd.f32 %v1209, %v1273
          %v1338 = vadd.f32 %v1210, %v1274
          %v1339 = vadd.f32 %v1211, %v1275
          %v1340 = vadd.f32 %v1212, %v1276
          %v1341 = vadd.f32 %v1213, %v1277
          %v1342 = vadd.f32 %v1214, %v1278
          %v1343 = vadd.f32 %v1215, %v1279
          %v1344 = vadd.f32 %v1216, %v1280
          %v1345 = vadd.f32 %v1217, %v1281
          %v1346 = vadd.f32 %v1218, %v1282
          %v1347 = vadd.f32 %v1219, %v1283
          %v1348 = vadd.f32 %v1220, %v1284
          %v1349 = vadd.f32 %v1221, %v1285
          %v1350 = vadd.f32 %v1222, %v1286
          %v1351 = vadd.f32 %v1223, %v1287
          %v1352 = vadd.f32 %v1224, %v1288
          %v1353 = vadd.f32 %v1225, %v1289
          %v1354 = vadd.f32 %v1226, %v1290
          %v1355 = vadd.f32 %v1227, %v1291
          %v1356 = vadd.f32 %v1228, %v1292
          %v1357 = vadd.f32 %v1229, %v1293
          %v1358 = vadd.f32 %v1230, %v1294
          %v1359 = vadd.f32 %v1231, %v1295
          %v1360 = vadd.f32 %v1232, %v1296
          %v1361 = vadd.f32 %v1233, %v1297
          %v1362 = vadd.f32 %v1234, %v1298
          %v1363 = vadd.f32 %v1235, %v1299
          %v1364 = vadd.f32 %v1236, %v1300
          %v1365 = vadd.f32 %v1237, %v1301
          %v1366 = vadd.f32 %v1238, %v1302
          %v1367 = vadd.f32 %v1239, %v1303
          %v1368 = vadd.f32 %v1240, %v1304
          %v1369 = vadd.f32 %v1241, %v1305
          %v1370 = vadd.f32 %v1242, %v1306
          %v1371 = vadd.f32 %v1243, %v1307
          %v1372 = vadd.f32 %v1244, %v1308
          %v1373 = vadd.f32 %v1245, %v1309
          %v1374 = vadd.f32 %v1246, %v1310
          %v1375 = vadd.f32 %v1247, %v1311
          %v1376 = vadd.f32 %v1248, %v1312
          %v1377 = vadd.f32 %v1249, %v1313
          %v1378 = vadd.f32 %v1250, %v1314
          %v1379 = vadd.f32 %v1251, %v1315
          %v1380 = vadd.f32 %v1252, %v1316
          %v1381 = vadd.f32 %v1253, %v1317
          %v1382 = vadd.f32 %v1254, %v1318
          %v1383 = vadd.f32 %v1255, %v1319
          %v1384 = vadd.f32 %v1256, %v1320
          %v1385 = vadd.f32 %v1257, %v1321
          %v1386 = vsub.f32 %v1322, %v641
          %v1387 = vsub.f32 %v1323, %v642
          %v1388 = vsub.f32 %v1324, %v643
          %v1389 = vsub.f32 %v1325, %v644
          %v1390 = vsub.f32 %v1326, %v645
          %v1391 = vsub.f32 %v1327, %v646
          %v1392 = vsub.f32 %v1328, %v647
          %v1393 = vsub.f32 %v1329, %v648
          %v1394 = vsub.f32 %v1330, %v649
          %v1395 = vsub.f32 %v1331, %v650
          %v1396 = vsub.f32 %v1332, %v651
          %v1397 = vsub.f32 %v1333, %v652
          %v1398 = vsub.f32 %v1334, %v653
          %v1399 = vsub.f32 %v1335, %v654
          %v1400 = vsub.f32 %v1336, %v655
          %v1401 = vsub.f32 %v1337, %v656
          %v1402 = vsub.f32 %v1338, %v657
          %v1403 = vsub.f32 %v1339, %v658
          %v1404 = vsub.f32 %v1340, %v659
          %v1405 = vsub.f32 %v1341, %v660
          %v1406 = vsub.f32 %v1342, %v661
          %v1407 = vsub.f32 %v1343, %v662
          %v1408 = vsub.f32 %v1344, %v663
          %v1409 = vsub.f32 %v1345, %v664
          %v1410 = vsub.f32 %v1346, %v665
          %v1411 = vsub.f32 %v1347, %v666
          %v1412 = vsub.f32 %v1348, %v667
          %v1413 = vsub.f32 %v1349, %v668
          %v1414 = vsub.f32 %v1350, %v669
          %v1415 = vsub.f32 %v1351, %v670
          %v1416 = vsub.f32 %v1352, %v671
          %v1417 = vsub.f32 %v1353, %v672
          %v1418 = vsub.f32 %v1354, %v673
          %v1419 = vsub.f32 %v1355, %v674
          %v1420 = vsub.f32 %v1356, %v675
          %v1421 = vsub.f32 %v1357, %v676
          %v1422 = vsub.f32 %v1358, %v677
          %v1423 = vsub.f32 %v1359, %v678
          %v1424 = vsub.f32 %v1360, %v679
          %v1425 = vsub.f32 %v1361, %v680
          %v1426 = vsub.f32 %v1362, %v681
          %v1427 = vsub.f32 %v1363, %v682
          %v1428 = vsub.f32 %v1364, %v683
          %v1429 = vsub.f32 %v1365, %v684
          %v1430 = vsub.f32 %v1366, %v685
          %v1431 = vsub.f32 %v1367, %v686
          %v1432 = vsub.f32 %v1368, %v687
          %v1433 = vsub.f32 %v1369, %v688
          %v1434 = vsub.f32 %v1370, %v689
          %v1435 = vsub.f32 %v1371, %v690
          %v1436 = vsub.f32 %v1372, %v691
          %v1437 = vsub.f32 %v1373, %v692
          %v1438 = vsub.f32 %v1374, %v693
          %v1439 = vsub.f32 %v1375, %v694
          %v1440 = vsub.f32 %v1376, %v695
          %v1441 = vsub.f32 %v1377, %v696
          %v1442 = vsub.f32 %v1378, %v697
          %v1443 = vsub.f32 %v1379, %v698
          %v1444 = vsub.f32 %v1380, %v699
          %v1445 = vsub.f32 %v1381, %v700
          %v1446 = vsub.f32 %v1382, %v701
          %v1447 = vsub.f32 %v1383, %v702
          %v1448 = vsub.f32 %v1384, %v703
          %v1449 = vsub.f32 %v1385, %v704
          %v1450 = vsub.f32 %v1386, 1.0
          %v1451 = vsub.f32 %v1387, 1.0
          %v1452 = vsub.f32 %v1388, 1.0
          %v1453 = vsub.f32 %v1389, 1.0
          %v1454 = vsub.f32 %v1390, 1.0
          %v1455 = vsub.f32 %v1391, 1.0
          %v1456 = vsub.f32 %v1392, 1.0
          %v1457 = vsub.f32 %v1393, 1.0
          %v1458 = vsub.f32 %v1394, 1.0
          %v1459 = vsub.f32 %v1395, 1.0
          %v1460 = vsub.f32 %v1396, 1.0
          %v1461 = vsub.f32 %v1397, 1.0
          %v1462 = vsub.f32 %v1398, 1.0
          %v1463 = vsub.f32 %v1399, 1.0
          %v1464 = vsub.f32 %v1400, 1.0
          %v1465 = vsub.f32 %v1401, 1.0
          %v1466 = vsub.f32 %v1402, 1.0
          %v1467 = vsub.f32 %v1403, 1.0
          %v1468 = vsub.f32 %v1404, 1.0
          %v1469 = vsub.f32 %v1405, 1.0
          %v1470 = vsub.f32 %v1406, 1.0
          %v1471 = vsub.f32 %v1407, 1.0
          %v1472 = vsub.f32 %v1408, 1.0
          %v1473 = vsub.f32 %v1409, 1.0
          %v1474 = vsub.f32 %v1410, 1.0
          %v1475 = vsub.f32 %v1411, 1.0
          %v1476 = vsub.f32 %v1412, 1.0
          %v1477 = vsub.f32 %v1413, 1.0
          %v1478 = vsub.f32 %v1414, 1.0
          %v1479 = vsub.f32 %v1415, 1.0
          %v1480 = vsub.f32 %v1416, 1.0
          %v1481 = vsub.f32 %v1417, 1.0
          %v1482 = vsub.f32 %v1418, 1.0
          %v1483 = vsub.f32 %v1419, 1.0
          %v1484 = vsub.f32 %v1420, 1.0
          %v1485 = vsub.f32 %v1421, 1.0
          %v1486 = vsub.f32 %v1422, 1.0
          %v1487 = vsub.f32 %v1423, 1.0
          %v1488 = vsub.f32 %v1424, 1.0
          %v1489 = vsub.f32 %v1425, 1.0
          %v1490 = vsub.f32 %v1426, 1.0
          %v1491 = vsub.f32 %v1427, 1.0
          %v1492 = vsub.f32 %v1428, 1.0
          %v1493 = vsub.f32 %v1429, 1.0
          %v1494 = vsub.f32 %v1430, 1.0
          %v1495 = vsub.f32 %v1431, 1.0
          %v1496 = vsub.f32 %v1432, 1.0
          %v1497 = vsub.f32 %v1433, 1.0
          %v1498 = vsub.f32 %v1434, 1.0
          %v1499 = vsub.f32 %v1435, 1.0
          %v1500 = vsub.f32 %v1436, 1.0
          %v1501 = vsub.f32 %v1437, 1.0
          %v1502 = vsub.f32 %v1438, 1.0
          %v1503 = vsub.f32 %v1439, 1.0
          %v1504 = vsub.f32 %v1440, 1.0
          %v1505 = vsub.f32 %v1441, 1.0
          %v1506 = vsub.f32 %v1442, 1.0
          %v1507 = vsub.f32 %v1443, 1.0
          %v1508 = vsub.f32 %v1444, 1.0
          %v1509 = vsub.f32 %v1445, 1.0
          %v1510 = vsub.f32 %v1446, 1.0
          %v1511 = vsub.f32 %v1447, 1.0
          %v1512 = vsub.f32 %v1448, 1.0
          %v1513 = vsub.f32 %v1449, 1.0
          %v1514 = vadd.f32 %v1450, %v1451
          %v1515 = vadd.f32 %v1514, %v1452
          %v1516 = vadd.f32 %v1515, %v1453
          %v1517 = vadd.f32 %v1516, %v1454
          %v1518 = vadd.f32 %v1517, %v1455
          %v1519 = vadd.f32 %v1518, %v1456
          %v1520 = vadd.f32 %v1519, %v1457
          %v1521 = vadd.f32 %v1520, %v1458
          %v1522 = vadd.f32 %v1521, %v1459
          %v1523 = vadd.f32 %v1522, %v1460
          %v1524 = vadd.f32 %v1523, %v1461
          %v1525 = vadd.f32 %v1524, %v1462
          %v1526 = vadd.f32 %v1525, %v1463
          %v1527 = vadd.f32 %v1526, %v1464
          %v1528 = vadd.f32 %v1527, %v1465
          %v1529 = vadd.f32 %v1528, %v1466
          %v1530 = vadd.f32 %v1529, %v1467
          %v1531 = vadd.f32 %v1530, %v1468
          %v1532 = vadd.f32 %v1531, %v1469
          %v1533 = vadd.f32 %v1532, %v1470
          %v1534 = vadd.f32 %v1533, %v1471
          %v1535 = vadd.f32 %v1534, %v1472
          %v1536 = vadd.f32 %v1535, %v1473
          %v1537 = vadd.f32 %v1536, %v1474
          %v1538 = vadd.f32 %v1537, %v1475
          %v1539 = vadd.f32 %v1538, %v1476
          %v1540 = vadd.f32 %v1539, %v1477
          %v1541 = vadd.f32 %v1540, %v1478
          %v1542 = vadd.f32 %v1541, %v1479
          %v1543 = vadd.f32 %v1542, %v1480
          %v1544 = vadd.f32 %v1543, %v1481
          %v1545 = vadd.f32 %v1544, %v1482
          %v1546 = vadd.f32 %v1545, %v1483
          %v1547 = vadd.f32 %v1546, %v1484
          %v1548 = vadd.f32 %v1547, %v1485
          %v1549 = vadd.f32 %v1548, %v1486
          %v1550 = vadd.f32 %v1549, %v1487
          %v1551 = vadd.f32 %v1550, %v1488
          %v1552 = vadd.f32 %v1551, %v1489
          %v1553 = vadd.f32 %v1552, %v1490
          %v1554 = vadd.f32 %v1553, %v1491
          %v1555 = vadd.f32 %v1554, %v1492
          %v1556 = vadd.f32 %v1555, %v1493
          %v1557 = vadd.f32 %v1556, %v1494
          %v1558 = vadd.f32 %v1557, %v1495
          %v1559 = vadd.f32 %v1558, %v1496
          %v1560 = vadd.f32 %v1559, %v1497
          %v1561 = vadd.f32 %v1560, %v1498
          %v1562 = vadd.f32 %v1561, %v1499
          %v1563 = vadd.f32 %v1562, %v1500
          %v1564 = vadd.f32 %v1563, %v1501
          %v1565 = vadd.f32 %v1564, %v1502
          %v1566 = vadd.f32 %v1565, %v1503
          %v1567 = vadd.f32 %v1566, %v1504
          %v1568 = vadd.f32 %v1567, %v1505
          %v1569 = vadd.f32 %v1568, %v1506
          %v1570 = vadd.f32 %v1569, %v1507
          %v1571 = vadd.f32 %v1570, %v1508
          %v1572 = vadd.f32 %v1571, %v1509
          %v1573 = vadd.f32 %v1572, %v1510
          %v1574 = vadd.f32 %v1573, %v1511
          %v1575 = vadd.f32 %v1574, %v1512
          %v1576 = vadd.f32 %v1575, %v1513
          %1577 = vadd.xlane.f32.xlu0 %v1576
          %v1578 = vpop.xlane.xlu0 %1577
          %v1579 = vrot.slane %v1578, 4
          %v1580 = vadd.f32 %v1578, %v1579
          %v1581 = vrot.slane %v1580, 2
          %v1582 = vadd.f32 %v1580, %v1581
          %v1583 = vrot.slane %v1582, 1
          %v1584 = vadd.f32 %v1582, %v1583
          %s1585 = vtos %v1584
          %s1586 = smul.f32 %s1585, 0.5
          // Predicated region
          $region77: #{bayesian_linear_forward.1} parent=75 // pred_check
            %p1587 = pneg %p1089
          $region78: #{bayesian_linear_forward.1} parent=75 // pred_check_branch
            %1589 = sbr.rel (%p1587) target = $region80
          $region79: #{bayesian_linear_forward.1} parent=75 // pred_region
            %v1590 = vld [vmem:[%s563] sm:$0x3]
            %v1591 = vld [vmem:[%s568] sm:$0x3]
            %v1592 = vmul.f32 %v1591, 0.5
            %v1593 = vmul.f32 %v1592, 1.442695
            %v1594 = vpow.pop %v1593
            %v1595 = vmul.f32 %v1594, %v1594
            %v1596 = vmul.f32 %v1590, %v1590
            %v1597 = vadd.f32 %v1595, %v1596
            %v1598 = vsub.f32 %v1597, %v1591
            %v1599 = vsub.f32 %v1598, 1.0
            %v1601 = vlaneseq
            %v1602 = vshrl.u32 %v1601, 7
            %v1603 = vsub.s32 0, %v1602
            %v1604 = vrot.slane %v1599, %v1603
            %v1605 = vlaneseq
            %v1606 = vshrl.u32 %v1605, 7
            %v1607 = vsub.s32 1, %v1606
            %v1608 = vrot.slane %v1599, %v1607
            %vm1611 = vcmask 1040384
            %v1612 = vsel %vm1611, %v1604, 0.0
            %v1613 = vsel %vm1611, %v1608, 0.0
            %v1614 = vadd.f32 %v1612, %v1613
            %1615 = vadd.xlane.f32.xlu0 %v1614
            %v1616 = vpop.xlane.xlu0 %1615
            %v1617 = vrot.slane %v1616, 4
            %v1618 = vadd.f32 %v1616, %v1617
            %v1619 = vrot.slane %v1618, 2
            %v1620 = vadd.f32 %v1618, %v1619
            %v1621 = vrot.slane %v1620, 1
            %v1622 = vadd.f32 %v1620, %v1621
            %s1623 = vtos %v1622
            %s1624 = smul.f32 %s1623, 0.5
            %s1625 = sadd.f32 %s1586, %s1624
            %v1626 = vstv %s1625
            %v1627 = vadd.f32 %v1626, 0.0
            %1628 = vst [vmem:[%s576] sm:$0xff] %v1627
          $region80: #{bayesian_linear_forward.1} parent=75 // pred_fallthru
            _
          %p1629 = scmp.gt.s32.totalorder %s39, 0
          // Predicated region
          $region81: #{bayesian_linear_forward.1} parent=75 // pred_check
            %p1630 = pneg %p1629
          $region82: #{bayesian_linear_forward.1} parent=75 // pred_check_branch
            %1632 = sbr.rel (%p1630) target = $region84
          $region83: #{bayesian_linear_forward.1} parent=75 // pred_region
            %v1633 = vld [vmem:[%s576] sm:$0xff]
            %v1634 = vstv %s1586
            %v1635 = vadd.f32 %v1633, %v1634
            %1636 = vst [vmem:[%s576] sm:$0xff] %v1635
          $region84: #{bayesian_linear_forward.1} parent=75 // pred_fallthru
            _
        $region76: #{bayesian_linear_forward.1} parent=47 // pred_fallthru
          _
        %p1637 = scmp.eq.s32.totalorder %s39, 1
        // Predicated region
        $region85: #{bayesian_linear_forward.1} parent=47 // pred_check
          %p1638 = pneg %p1637
        $region86: #{bayesian_linear_forward.1} parent=47 // pred_check_branch
          %1640 = sbr.rel (%p1638) target = $region88
        $region87: #{bayesian_linear_forward.1} parent=47 // pred_region
          %v1641 = vld [vmem:[%s563] sm:$0x3]
          %v1642 = vld [vmem:[%s568] sm:$0x3]
          %v1643 = vmul.f32 %v1642, 0.5
          %v1644 = vmul.f32 %v1643, 1.442695
          %v1645 = vpow.pop %v1644
          %v1646 = vld [vmem:[%s487] sm:$0x3]
          %v1647 = vmul.f32 %v1645, %v1646
          %v1648 = vadd.f32 %v1641, %v1647
          %v1649 = vld [vmem:[#allocation2] sm:$0xff]
          %v1650 = vld [vmem:[#allocation2 + $0x8] sm:$0xff]
          %v1651 = vld [vmem:[#allocation2 + $0x10] sm:$0xff]
          %v1652 = vld [vmem:[#allocation2 + $0x18] sm:$0xff]
          %v1654 = vlaneseq
          %v1655 = vshrl.u32 %v1654, 7
          %v1656 = vsub.s32 0, %v1655
          %v1657 = vrot.slane %v1648, %v1656
          %v1658 = vlaneseq
          %v1659 = vshrl.u32 %v1658, 7
          %v1660 = vsub.s32 1, %v1659
          %v1661 = vrot.slane %v1648, %v1660
          %v1664 = vadd.f32 %v1649, %v1657
          %v1665 = vadd.f32 %v1650, %v1661
          %v1666 = vadd.f32 %v1651, %v1657
          %v1667 = vadd.f32 %v1652, %v1661
          %1668 = vst [vmem:[%s545] sm:$0xff] %v1664
          %1669 = vst [vmem:[%s545 + $0x8] sm:$0xff] %v1665
          %1670 = vst [vmem:[%s545 + $0x10] sm:$0xff] %v1666
          %1671 = vst [vmem:[%s545 + $0x18] sm:$0xff] %v1667
        $region88: #{bayesian_linear_forward.1} parent=47 // pred_fallthru
          _
        %s1672 = sand.u32 %s251, 1
        %s1673 = scalar_lea.sflag [#allocation5], %s1672
        %s1674 = sand.u32 %s251, 1
        %s1675 = smul.addr %s1674, 32
        %s1676 = scalar_lea.vmem [#allocation12], %s1675
        %p1677 = scmp.lt.s32.totalorder %s37, 1
        %s1678 = scalar_select %p1677, %s37, 1
        %s1679 = smul.addr %s1678, 8
        %s1680 = scalar_lea.vmem %s8, %s1679
        // Predicated region
        $region89: #{bayesian_linear_forward.1} parent=47 // pred_check
          %p1681 = pneg %p261
        $region90: #{bayesian_linear_forward.1} parent=47 // pred_check_branch
          %1683 = sbr.rel (%p1681) target = $region92
        $region91: #{bayesian_linear_forward.1} parent=47 // pred_region
          %s1684 = smul.u32 2, %s38
          %s1685 = smul.u32 2, %s37
          %s1687 = ssub.s32 512, 512
          %1688 = vsyncadd %s1673, %s1687
          %s1689 = smul.addr %s1684, 4
          %s1690 = sadd.s32 %s1685, %s1689
          %s1691 = smul.addr %s1690, 128
          %s1692 = scalar_lea.hbm %s7, %s1691
          %s1693 = sshll.u32 %s1676, 4
          %s1694 = int_to_ptr.vmem [resolvable:$true] %s1693
          %1699 = dma.vmem_to_hbm [thread:$0]  %s1694, 512, %s1692, %s1673, 256, 512, 16
        $region92: #{bayesian_linear_forward.1} parent=47 // pred_fallthru
          _
        // Predicated region
        $region93: #{bayesian_linear_forward.1} parent=47 // pred_check
          %p1700 = pneg %p287
        $region94: #{bayesian_linear_forward.1} parent=47 // pred_check_branch
          %1702 = sbr.rel (%p1700) target = $region96
        $region95: #{bayesian_linear_forward.1} parent=47 // pred_region
          _
        $region96: #{bayesian_linear_forward.1} parent=47 // pred_fallthru
          _
      $region48: #{bayesian_linear_forward.1} parent=5 // pred_fallthru
        _
      %p1703 = scmp.le.s32.totalorder 2, %s27
      // Predicated region
      $region97: #{bayesian_linear_forward.1} parent=5 // pred_check
        %p1704 = pneg %p1703
      $region98: #{bayesian_linear_forward.1} parent=5 // pred_check_branch
        %1706 = sbr.rel (%p1704) target = $region100
      $region99: #{bayesian_linear_forward.1} parent=5 // pred_region
        %s1707 = ssub.s32 %s27, 2
        // Predicated region
        $region101: #{bayesian_linear_forward.1} parent=99 // pred_check
          %p1708 = pneg %p267
        $region102: #{bayesian_linear_forward.1} parent=99 // pred_check_branch
          %1710 = sbr.rel (%p1708) target = $region104
        $region103: #{bayesian_linear_forward.1} parent=99 // pred_region
          %s1711 = sand.u32 %s252, 1
          %s1712 = scalar_lea.sflag [#allocation5], %s1711
          %s1713 = sand.u32 %s252, 1
          %s1714 = smul.addr %s1713, 32
          %s1715 = scalar_lea.vmem [#allocation12], %s1714
          %1716 = dma.done %s1712, 512
        $region104: #{bayesian_linear_forward.1} parent=99 // pred_fallthru
          _
        // Predicated region
        $region105: #{bayesian_linear_forward.1} parent=99 // pred_check
          %p1717 = pneg %p293
        $region106: #{bayesian_linear_forward.1} parent=99 // pred_check_branch
          %1719 = sbr.rel (%p1717) target = $region108
        $region107: #{bayesian_linear_forward.1} parent=99 // pred_region
          %p1720 = scmp.lt.s32.totalorder %s40, 1
          %s1721 = scalar_select %p1720, %s40, 1
          %s1722 = smul.addr %s1721, 8
          %s1723 = scalar_lea.vmem %s8, %s1722
        $region108: #{bayesian_linear_forward.1} parent=99 // pred_fallthru
          _
      $region100: #{bayesian_linear_forward.1} parent=5 // pred_fallthru
        _
    $region6: #{bayesian_linear_forward.1} parent=1 // loop_footer
      %s31 = sadd.s32 1, %s27
    $region7: #{bayesian_linear_forward.1} parent=1 // loop_footer_branch
      %26 = sbr.rel target = $region3
    $region8: #{bayesian_linear_forward.1} parent=1 // loop_exit
      _
    %1724 = vsyncpa [#allocation4], 1
    %s1725 = scalar_lea.sflag [#allocation4], 1
    %1726 = vsyncpa %s1725, 1
    %1727 = vsyncpa [#allocation7], 1
    %s1728 = scalar_lea.sflag [#allocation7], 1
    %1729 = vsyncpa %s1728, 1
    %1730 = vsyncpa [#allocation10], 1
    %s1731 = scalar_lea.sflag [#allocation10], 1
    %1732 = vsyncpa %s1731, 1
    %1733 = vsyncpa [#allocation5], 1
    %s1734 = scalar_lea.sflag [#allocation5], 1
    %1735 = vsyncpa %s1734, 1

</llo_original>
